<compile_context>
chip_gen: v7x
topology: tpu7x:2x2x1
jax: 0.10.0
libtpu: 0.0.40
codegen_flags: <defaults>
</compile_context>

<pallas_src>
import functools

import jax
import jax.numpy as jnp
from jax.experimental import pallas as pl
from jax.experimental.pallas import tpu as pltpu


# ------------------------- fused matmul-chain kernel ------------------------ #
def _chain_kernel(*refs, relus):
    """refs = (x, w0, b0, w1, b1, ..., out).
    Computes h = x ; for each layer i: h = [relu](h @ w_i + b_i) ; out = h.
    Matmuls run on the MXU with bf16 inputs and f32 accumulation; the bias /
    ReLU epilogue is done in f32 (safe on v5e's non-bf16 VPU as well)."""
    x_ref, o_ref = refs[0], refs[-1]
    h = x_ref[...]
    if h.dtype != jnp.bfloat16:
        h = h.astype(jnp.bfloat16)
    n = len(relus)
    for i in range(n):
        w = refs[1 + 2 * i][...]                      # (K_i, N_i) bf16
        b = refs[2 + 2 * i][...]                      # (1,  N_i) f32
        acc = jnp.dot(h, w, preferred_element_type=jnp.float32) + b
        if relus[i]:
            acc = jnp.maximum(acc, 0.0)
        h = acc.astype(jnp.bfloat16) if i + 1 < n else acc
    o_ref[...] = h.astype(o_ref.dtype)


def _chain_call(x, layers, relus, out_dtype):
    """x: (M, K0); layers = [(w_i (K_i,N_i) bf16, b_i (1,N_i) f32), ...].
    One pallas_call, grid=(1,), every operand as a single full-array VMEM block
    (total working set < 1 MiB -- trivial even for v7x's 64 MiB VMEM)."""
    M = x.shape[0]
    n_out = layers[-1][0].shape[1]

    args = [x]
    in_specs = [pl.BlockSpec(x.shape, lambda i: (0, 0))]
    flops = 0
    nbytes = x.size * x.dtype.itemsize
    for w, b in layers:
        args += [w, b]
        in_specs += [pl.BlockSpec(w.shape, lambda i: (0, 0)),
                     pl.BlockSpec(b.shape, lambda i: (0, 0))]
        flops += 2 * M * w.shape[0] * w.shape[1]
        nbytes += w.size * w.dtype.itemsize + b.size * b.dtype.itemsize
    nbytes += M * n_out * (2 if out_dtype == jnp.bfloat16 else 4)

    return pl.pallas_call(
        functools.partial(_chain_kernel, relus=relus),
        out_shape=jax.ShapeDtypeStruct((M, n_out), out_dtype),
        grid=(1,),
        in_specs=in_specs,
        out_specs=pl.BlockSpec((M, n_out), lambda i: (0, 0)),
        compiler_params=pltpu.CompilerParams(
            dimension_semantics=("arbitrary",)),
        cost_estimate=pl.CostEstimate(
            flops=flops, transcendentals=0, bytes_accessed=nbytes),
    )(*args)


# --------------------------- conv via im2col (NHWC) ------------------------- #
def _im2col_nhwc(x, kh, kw, stride):
    """x: (B, H, W, C) -> (B*Ho*Wo, kh*kw*C), column order (ki, kj, c)."""
    B, H, W, C = x.shape
    Ho = (H - kh) // stride + 1
    Wo = (W - kw) // stride + 1
    patches = []
    for i in range(kh):
        for j in range(kw):
            patches.append(
                x[:, i:i + Ho * stride:stride, j:j + Wo * stride:stride, :])
    p = jnp.stack(patches, axis=3)                    # (B, Ho, Wo, kh*kw, C)
    return p.reshape(B * Ho * Wo, kh * kw * C), Ho, Wo


# ------------------------------ QRDQN parameters ---------------------------- #
def init_qrdqn_params(key, c, h, w, action_num, num_quantiles):
    """Torch-layout parameters: OIHW conv weights; fc weights stored (in, out)
    with input rows ordered by torch's NCHW flatten."""
    h1, w1 = (h - 8) // 4 + 1, (w - 8) // 4 + 1
    h2, w2 = (h1 - 4) // 2 + 1, (w1 - 4) // 2 + 1
    h3, w3 = h2 - 2, w2 - 2
    feat_dim = 64 * h3 * w3
    out_dim = action_num * num_quantiles
    ks = jax.random.split(key, 10)
    s = 0.05
    return {
        "c1w": s * jax.random.normal(ks[0], (32, c, 8, 8), jnp.float32),
        "c1b": s * jax.random.normal(ks[1], (32,), jnp.float32),
        "c2w": s * jax.random.normal(ks[2], (64, 32, 4, 4), jnp.float32),
        "c2b": s * jax.random.normal(ks[3], (64,), jnp.float32),
        "c3w": s * jax.random.normal(ks[4], (64, 64, 3, 3), jnp.float32),
        "c3b": s * jax.random.normal(ks[5], (64,), jnp.float32),
        "f1w": s * jax.random.normal(ks[6], (feat_dim, 512), jnp.float32),
        "f1b": s * jax.random.normal(ks[7], (512,), jnp.float32),
        "f2w": s * jax.random.normal(ks[8], (512, out_dim), jnp.float32),
        "f2b": s * jax.random.normal(ks[9], (out_dim,), jnp.float32),
    }


def prepare_params(params, h, w):
    """One-time layout conversion (hoisted out of the forward pass):
      * conv weights OIHW -> (kh*kw*Cin, Cout) channels-last im2col order, bf16
      * fc1 rows permuted from torch NCHW-flatten to NHWC-flatten order
      * biases as (1, N) f32 rows."""
    h1, w1 = (h - 8) // 4 + 1, (w - 8) // 4 + 1
    h2, w2 = (h1 - 4) // 2 + 1, (w1 - 4) // 2 + 1
    h3, w3 = h2 - 2, w2 - 2

    def conv_w(wi):
        co, ci, kh, kw = wi.shape
        return (wi.transpose(2, 3, 1, 0)
                .reshape(kh * kw * ci, co).astype(jnp.bfloat16))

    def bias(b):
        return b.reshape(1, -1).astype(jnp.float32)

    # torch row index: c*h3*w3 + i*w3 + j  ->  kernel row index: i*w3*64 + j*64 + c
    f1 = params["f1w"].reshape(64, h3, w3, 512).transpose(1, 2, 0, 3)
    f1 = f1.reshape(h3 * w3 * 64, 512)

    return {
        "c1w": conv_w(params["c1w"]), "c1b": bias(params["c1b"]),
        "c2w": conv_w(params["c2w"]), "c2b": bias(params["c2b"]),
        "c3w": conv_w(params["c3w"]), "c3b": bias(params["c3b"]),
        "f1w": f1.astype(jnp.bfloat16), "f1b": bias(params["f1b"]),
        "f2w": params["f2w"].astype(jnp.bfloat16), "f2b": bias(params["f2b"]),
    }


# ------------------------------- QRDQN forward ------------------------------ #
def qrdqn_forward(kparams, x, action_num, num_quantiles):
    """x: (B, C, H, W) float -> Z(x, .) of shape (B, action_num, num_quantiles)."""
    p = kparams
    x = jnp.transpose(x.astype(jnp.bfloat16), (0, 2, 3, 1))   # NCHW -> NHWC, once
    B = x.shape[0]

    # conv1 / conv2: channels-last im2col + one MXU matmul each (bf16 activations)
    cols, Ho, Wo = _im2col_nhwc(x, 8, 8, 4)
    h = _chain_call(cols, [(p["c1w"], p["c1b"])], (True,), jnp.bfloat16)
    h = h.reshape(B, Ho, Wo, 32)

    cols, Ho, Wo = _im2col_nhwc(h, 4, 4, 2)
    h = _chain_call(cols, [(p["c2w"], p["c2b"])], (True,), jnp.bfloat16)
    h = h.reshape(B, Ho, Wo, 64)

    # TODO(synk): fuse conv1+conv2 as well (in-kernel im2col via DMA'd NHWC
    # slices) to collapse the whole network into a single launch.

    cols, Ho3, Wo3 = _im2col_nhwc(h, 3, 3, 1)
    if Ho3 == 1 and Wo3 == 1:
        # Fused tail: conv3 (+ReLU) + flatten + fc1 (+ReLU) + fc2, one launch.
        z = _chain_call(
            cols,
            [(p["c3w"], p["c3b"]), (p["f1w"], p["f1b"]), (p["f2w"], p["f2b"])],
            (True, True, False), jnp.float32)
    else:
        # General spatial size: conv3 standalone, then fused fc1 + fc2.
        h = _chain_call(cols, [(p["c3w"], p["c3b"])], (True,), jnp.bfloat16)
        h = h.reshape(B, Ho3 * Wo3 * 64)
        z = _chain_call(h, [(p["f1w"], p["f1b"]), (p["f2w"], p["f2b"])],
                        (True, False), jnp.float32)
    return z.reshape(B, action_num, num_quantiles)


# ------------------------- pure-JAX reference check ------------------------- #
def qrdqn_reference(params, x, action_num, num_quantiles):
    def conv(x, w, b, s):
        y = jax.lax.conv_general_dilated(
            x, w, (s, s), "VALID",
            dimension_numbers=("NCHW", "OIHW", "NCHW"),
            precision=jax.lax.Precision.HIGHEST)
        return jax.nn.relu(y + b[None, :, None, None])
    h = conv(x, params["c1w"], params["c1b"], 4)
    h = conv(h, params["c2w"], params["c2b"], 2)
    h = conv(h, params["c3w"], params["c3b"], 1)
    h = h.reshape(h.shape[0], -1)                      # torch NCHW flatten
    h = jax.nn.relu(h @ params["f1w"] + params["f1b"])
    h = h @ params["f2w"] + params["f2b"]
    return h.reshape(-1, action_num, num_quantiles)


if __name__ == "__main__":
    # Small Atari-like shapes: batch=2, c=4 stacked frames, 36x36 input
    # (36 -> 8 -> 3 -> 1 through the three convs), 6 actions, 16 quantiles.
    B, C, H, W = 2, 4, 36, 36
    ACTION_NUM, NUM_QUANTILES = 6, 16

    key = jax.random.PRNGKey(0)
    pkey, xkey = jax.random.split(key)
    torch_params = init_qrdqn_params(pkey, C, H, W, ACTION_NUM, NUM_QUANTILES)
    kernel_params = prepare_params(torch_params, H, W)   # one-time relayout
    x = jax.random.normal(xkey, (B, C, H, W), jnp.float32)

    fwd = jax.jit(functools.partial(
        qrdqn_forward, action_num=ACTION_NUM, num_quantiles=NUM_QUANTILES))
    z = jax.block_until_ready(fwd(kernel_params, x))
    assert z.shape == (B, ACTION_NUM, NUM_QUANTILES), z.shape
    assert z.dtype == jnp.float32

    z_ref = jax.block_until_ready(
        qrdqn_reference(torch_params, x, ACTION_NUM, NUM_QUANTILES))
    # bf16 MXU inputs (5 chained matmuls) vs HIGHEST-precision f32 reference.
    assert jnp.allclose(z, z_ref, rtol=5e-2, atol=5e-2), float(
        jnp.max(jnp.abs(z - z_ref)))

    print("KERNEL_OK")
</pallas_src>

<mosaic_0001>
module attributes {stable_mosaic.version = 11 : i64} {
  func.func @_chain_kernel(%arg0: i32, %arg1: memref<128x256xbf16, #tpu.memory_space<vmem>>, %arg2: memref<256x32xbf16, #tpu.memory_space<vmem>>, %arg3: memref<1x32xf32, #tpu.memory_space<vmem>>, %arg4: memref<128x32xbf16, #tpu.memory_space<vmem>>) attributes {dimension_semantics = [#tpu.dimension_semantics<arbitrary>], iteration_bounds = array<i64: 1>, scalar_prefetch = 0 : i64, scratch_operands = 0 : i64, tpu.core_type = #tpu.core_type<tc>, window_params = [{pipeline_mode = #tpu.pipeline_mode<synchronous>, transform_indices = @transform_0, window_bounds = array<i64: 128, 256>}, {pipeline_mode = #tpu.pipeline_mode<synchronous>, transform_indices = @transform_1, window_bounds = array<i64: 256, 32>}, {pipeline_mode = #tpu.pipeline_mode<synchronous>, transform_indices = @transform_2, window_bounds = array<i64: 1, 32>}, {pipeline_mode = #tpu.pipeline_mode<synchronous>, transform_indices = @transform_3, window_bounds = array<i64: 128, 32>}]} {
    %c0 = arith.constant 0 : index
    %c0_0 = arith.constant 0 : index
    %0 = vector.load %arg1[%c0, %c0_0] : memref<128x256xbf16, #tpu.memory_space<vmem>>, vector<128x256xbf16>
    %c0_1 = arith.constant 0 : index
    %c0_2 = arith.constant 0 : index
    %1 = vector.load %arg2[%c0_1, %c0_2] : memref<256x32xbf16, #tpu.memory_space<vmem>>, vector<256x32xbf16>
    %c0_3 = arith.constant 0 : index
    %c0_4 = arith.constant 0 : index
    %2 = vector.load %arg3[%c0_3, %c0_4] : memref<1x32xf32, #tpu.memory_space<vmem>>, vector<1x32xf32>
    %cst = arith.constant dense<0.000000e+00> : vector<128x32xf32>
    %3 = tpu.matmul %0, %1, %cst {dimension_numbers = #tpu.dot_dimension_numbers<[1], [0], [0], [1], [0, 0, 1, 1], [], []>} : vector<128x256xbf16>, vector<256x32xbf16>, vector<128x32xf32> -> vector<128x32xf32>
    %4 = vector.broadcast %2 : vector<1x32xf32> to vector<128x32xf32>
    %5 = arith.addf %3, %4 : vector<128x32xf32>
    %cst_5 = arith.constant 0.000000e+00 : f32
    %6 = vector.broadcast %cst_5 : f32 to vector<128x32xf32>
    %7 = arith.maximumf %5, %6 : vector<128x32xf32>
    %8 = arith.truncf %7 : vector<128x32xf32> to vector<128x32xbf16>
    %c0_6 = arith.constant 0 : index
    %c0_7 = arith.constant 0 : index
    %9 = vector.load %arg4[%c0_6, %c0_7] : memref<128x32xbf16, #tpu.memory_space<vmem>>, vector<128x32xbf16>
    tpu.vector_store %arg4[%c0_6, %c0_7], %8 {strides = array<i32>} : memref<128x32xbf16, #tpu.memory_space<vmem>>, vector<128x32xbf16>,
    return
  }
  func.func @transform_0(%arg0: i32) -> (i32, i32) {
    %c0_i32 = arith.constant 0 : i32
    %c0_i32_0 = arith.constant 0 : i32
    %c0_i32_1 = arith.constant 0 : i32
    return %c0_i32, %c0_i32_0 : i32, i32
  }
  func.func @transform_1(%arg0: i32) -> (i32, i32) {
    %c0_i32 = arith.constant 0 : i32
    %c0_i32_0 = arith.constant 0 : i32
    %c0_i32_1 = arith.constant 0 : i32
    return %c0_i32, %c0_i32_0 : i32, i32
  }
  func.func @transform_2(%arg0: i32) -> (i32, i32) {
    %c0_i32 = arith.constant 0 : i32
    %c0_i32_0 = arith.constant 0 : i32
    %c0_i32_1 = arith.constant 0 : i32
    return %c0_i32, %c0_i32_0 : i32, i32
  }
  func.func @transform_3(%arg0: i32) -> (i32, i32) {
    %c0_i32 = arith.constant 0 : i32
    %c0_i32_0 = arith.constant 0 : i32
    %c0_i32_1 = arith.constant 0 : i32
    return %c0_i32, %c0_i32_0 : i32, i32
  }
}

module attributes {stable_mosaic.version = 11 : i64} {
  func.func @_chain_kernel(%arg0: i32, %arg1: memref<18x512xbf16, #tpu.memory_space<vmem>>, %arg2: memref<512x64xbf16, #tpu.memory_space<vmem>>, %arg3: memref<1x64xf32, #tpu.memory_space<vmem>>, %arg4: memref<18x64xbf16, #tpu.memory_space<vmem>>) attributes {dimension_semantics = [#tpu.dimension_semantics<arbitrary>], iteration_bounds = array<i64: 1>, scalar_prefetch = 0 : i64, scratch_operands = 0 : i64, tpu.core_type = #tpu.core_type<tc>, window_params = [{pipeline_mode = #tpu.pipeline_mode<synchronous>, transform_indices = @transform_0, window_bounds = array<i64: 18, 512>}, {pipeline_mode = #tpu.pipeline_mode<synchronous>, transform_indices = @transform_1, window_bounds = array<i64: 512, 64>}, {pipeline_mode = #tpu.pipeline_mode<synchronous>, transform_indices = @transform_2, window_bounds = array<i64: 1, 64>}, {pipeline_mode = #tpu.pipeline_mode<synchronous>, transform_indices = @transform_3, window_bounds = array<i64: 18, 64>}]} {
    %c0 = arith.constant 0 : index
    %c0_0 = arith.constant 0 : index
    %0 = vector.load %arg1[%c0, %c0_0] : memref<18x512xbf16, #tpu.memory_space<vmem>>, vector<18x512xbf16>
    %c0_1 = arith.constant 0 : index
    %c0_2 = arith.constant 0 : index
    %1 = vector.load %arg2[%c0_1, %c0_2] : memref<512x64xbf16, #tpu.memory_space<vmem>>, vector<512x64xbf16>
    %c0_3 = arith.constant 0 : index
    %c0_4 = arith.constant 0 : index
    %2 = vector.load %arg3[%c0_3, %c0_4] : memref<1x64xf32, #tpu.memory_space<vmem>>, vector<1x64xf32>
    %cst = arith.constant dense<0.000000e+00> : vector<18x64xf32>
    %3 = tpu.matmul %0, %1, %cst {dimension_numbers = #tpu.dot_dimension_numbers<[1], [0], [0], [1], [0, 0, 1, 1], [], []>} : vector<18x512xbf16>, vector<512x64xbf16>, vector<18x64xf32> -> vector<18x64xf32>
    %4 = vector.broadcast %2 : vector<1x64xf32> to vector<18x64xf32>
    %5 = arith.addf %3, %4 : vector<18x64xf32>
    %cst_5 = arith.constant 0.000000e+00 : f32
    %6 = vector.broadcast %cst_5 : f32 to vector<18x64xf32>
    %7 = arith.maximumf %5, %6 : vector<18x64xf32>
    %8 = arith.truncf %7 : vector<18x64xf32> to vector<18x64xbf16>
    %c0_6 = arith.constant 0 : index
    %c0_7 = arith.constant 0 : index
    %9 = vector.load %arg4[%c0_6, %c0_7] : memref<18x64xbf16, #tpu.memory_space<vmem>>, vector<18x64xbf16>
    tpu.vector_store %arg4[%c0_6, %c0_7], %8 {strides = array<i32>} : memref<18x64xbf16, #tpu.memory_space<vmem>>, vector<18x64xbf16>,
    return
  }
  func.func @transform_0(%arg0: i32) -> (i32, i32) {
    %c0_i32 = arith.constant 0 : i32
    %c0_i32_0 = arith.constant 0 : i32
    %c0_i32_1 = arith.constant 0 : i32
    return %c0_i32, %c0_i32_0 : i32, i32
  }
  func.func @transform_1(%arg0: i32) -> (i32, i32) {
    %c0_i32 = arith.constant 0 : i32
    %c0_i32_0 = arith.constant 0 : i32
    %c0_i32_1 = arith.constant 0 : i32
    return %c0_i32, %c0_i32_0 : i32, i32
  }
  func.func @transform_2(%arg0: i32) -> (i32, i32) {
    %c0_i32 = arith.constant 0 : i32
    %c0_i32_0 = arith.constant 0 : i32
    %c0_i32_1 = arith.constant 0 : i32
    return %c0_i32, %c0_i32_0 : i32, i32
  }
  func.func @transform_3(%arg0: i32) -> (i32, i32) {
    %c0_i32 = arith.constant 0 : i32
    %c0_i32_0 = arith.constant 0 : i32
    %c0_i32_1 = arith.constant 0 : i32
    return %c0_i32, %c0_i32_0 : i32, i32
  }
}

module attributes {stable_mosaic.version = 11 : i64} {
  func.func @_chain_kernel(%arg0: i32, %arg1: memref<2x576xbf16, #tpu.memory_space<vmem>>, %arg2: memref<576x64xbf16, #tpu.memory_space<vmem>>, %arg3: memref<1x64xf32, #tpu.memory_space<vmem>>, %arg4: memref<64x512xbf16, #tpu.memory_space<vmem>>, %arg5: memref<1x512xf32, #tpu.memory_space<vmem>>, %arg6: memref<512x96xbf16, #tpu.memory_space<vmem>>, %arg7: memref<1x96xf32, #tpu.memory_space<vmem>>, %arg8: memref<2x96xf32, #tpu.memory_space<vmem>>) attributes {dimension_semantics = [#tpu.dimension_semantics<arbitrary>], iteration_bounds = array<i64: 1>, scalar_prefetch = 0 : i64, scratch_operands = 0 : i64, tpu.core_type = #tpu.core_type<tc>, window_params = [{pipeline_mode = #tpu.pipeline_mode<synchronous>, transform_indices = @transform_0, window_bounds = array<i64: 2, 576>}, {pipeline_mode = #tpu.pipeline_mode<synchronous>, transform_indices = @transform_1, window_bounds = array<i64: 576, 64>}, {pipeline_mode = #tpu.pipeline_mode<synchronous>, transform_indices = @transform_2, window_bounds = array<i64: 1, 64>}, {pipeline_mode = #tpu.pipeline_mode<synchronous>, transform_indices = @transform_3, window_bounds = array<i64: 64, 512>}, {pipeline_mode = #tpu.pipeline_mode<synchronous>, transform_indices = @transform_4, window_bounds = array<i64: 1, 512>}, {pipeline_mode = #tpu.pipeline_mode<synchronous>, transform_indices = @transform_5, window_bounds = array<i64: 512, 96>}, {pipeline_mode = #tpu.pipeline_mode<synchronous>, transform_indices = @transform_6, window_bounds = array<i64: 1, 96>}, {pipeline_mode = #tpu.pipeline_mode<synchronous>, transform_indices = @transform_7, window_bounds = array<i64: 2, 96>}]} {
    %c0 = arith.constant 0 : index
    %c0_0 = arith.constant 0 : index
    %0 = vector.load %arg1[%c0, %c0_0] : memref<2x576xbf16, #tpu.memory_space<vmem>>, vector<2x576xbf16>
    %c0_1 = arith.constant 0 : index
    %c0_2 = arith.constant 0 : index
    %1 = vector.load %arg2[%c0_1, %c0_2] : memref<576x64xbf16, #tpu.memory_space<vmem>>, vector<576x64xbf16>
    %c0_3 = arith.constant 0 : index
    %c0_4 = arith.constant 0 : index
    %2 = vector.load %arg3[%c0_3, %c0_4] : memref<1x64xf32, #tpu.memory_space<vmem>>, vector<1x64xf32>
    %cst = arith.constant dense<0.000000e+00> : vector<2x64xf32>
    %3 = tpu.matmul %0, %1, %cst {dimension_numbers = #tpu.dot_dimension_numbers<[1], [0], [0], [1], [0, 0, 1, 1], [], []>} : vector<2x576xbf16>, vector<576x64xbf16>, vector<2x64xf32> -> vector<2x64xf32>
    %4 = vector.broadcast %2 : vector<1x64xf32> to vector<2x64xf32>
    %5 = arith.addf %3, %4 : vector<2x64xf32>
    %cst_5 = arith.constant 0.000000e+00 : f32
    %6 = vector.broadcast %cst_5 : f32 to vector<2x64xf32>
    %7 = arith.maximumf %5, %6 : vector<2x64xf32>
    %8 = arith.truncf %7 : vector<2x64xf32> to vector<2x64xbf16>
    %c0_6 = arith.constant 0 : index
    %c0_7 = arith.constant 0 : index
    %9 = vector.load %arg4[%c0_6, %c0_7] : memref<64x512xbf16, #tpu.memory_space<vmem>>, vector<64x512xbf16>
    %c0_8 = arith.constant 0 : index
    %c0_9 = arith.constant 0 : index
    %10 = vector.load %arg5[%c0_8, %c0_9] : memref<1x512xf32, #tpu.memory_space<vmem>>, vector<1x512xf32>
    %cst_10 = arith.constant dense<0.000000e+00> : vector<2x512xf32>
    %11 = tpu.matmul %8, %9, %cst_10 {dimension_numbers = #tpu.dot_dimension_numbers<[1], [0], [0], [1], [0, 0, 1, 1], [], []>} : vector<2x64xbf16>, vector<64x512xbf16>, vector<2x512xf32> -> vector<2x512xf32>
    %12 = vector.broadcast %10 : vector<1x512xf32> to vector<2x512xf32>
    %13 = arith.addf %11, %12 : vector<2x512xf32>
    %cst_11 = arith.constant 0.000000e+00 : f32
    %14 = vector.broadcast %cst_11 : f32 to vector<2x512xf32>
    %15 = arith.maximumf %13, %14 : vector<2x512xf32>
    %16 = arith.truncf %15 : vector<2x512xf32> to vector<2x512xbf16>
    %c0_12 = arith.constant 0 : index
    %c0_13 = arith.constant 0 : index
    %17 = vector.load %arg6[%c0_12, %c0_13] : memref<512x96xbf16, #tpu.memory_space<vmem>>, vector<512x96xbf16>
    %c0_14 = arith.constant 0 : index
    %c0_15 = arith.constant 0 : index
    %18 = vector.load %arg7[%c0_14, %c0_15] : memref<1x96xf32, #tpu.memory_space<vmem>>, vector<1x96xf32>
    %cst_16 = arith.constant dense<0.000000e+00> : vector<2x96xf32>
    %19 = tpu.matmul %16, %17, %cst_16 {dimension_numbers = #tpu.dot_dimension_numbers<[1], [0], [0], [1], [0, 0, 1, 1], [], []>} : vector<2x512xbf16>, vector<512x96xbf16>, vector<2x96xf32> -> vector<2x96xf32>
    %20 = vector.broadcast %18 : vector<1x96xf32> to vector<2x96xf32>
    %21 = arith.addf %19, %20 : vector<2x96xf32>
    %c0_17 = arith.constant 0 : index
    %c0_18 = arith.constant 0 : index
    %22 = vector.load %arg8[%c0_17, %c0_18] : memref<2x96xf32, #tpu.memory_space<vmem>>, vector<2x96xf32>
    tpu.vector_store %arg8[%c0_17, %c0_18], %21 {strides = array<i32>} : memref<2x96xf32, #tpu.memory_space<vmem>>, vector<2x96xf32>,
    return
  }
  func.func @transform_0(%arg0: i32) -> (i32, i32) {
    %c0_i32 = arith.constant 0 : i32
    %c0_i32_0 = arith.constant 0 : i32
    %c0_i32_1 = arith.constant 0 : i32
    return %c0_i32, %c0_i32_0 : i32, i32
  }
  func.func @transform_1(%arg0: i32) -> (i32, i32) {
    %c0_i32 = arith.constant 0 : i32
    %c0_i32_0 = arith.constant 0 : i32
    %c0_i32_1 = arith.constant 0 : i32
    return %c0_i32, %c0_i32_0 : i32, i32
  }
  func.func @transform_2(%arg0: i32) -> (i32, i32) {
    %c0_i32 = arith.constant 0 : i32
    %c0_i32_0 = arith.constant 0 : i32
    %c0_i32_1 = arith.constant 0 : i32
    return %c0_i32, %c0_i32_0 : i32, i32
  }
  func.func @transform_3(%arg0: i32) -> (i32, i32) {
    %c0_i32 = arith.constant 0 : i32
    %c0_i32_0 = arith.constant 0 : i32
    %c0_i32_1 = arith.constant 0 : i32
    return %c0_i32, %c0_i32_0 : i32, i32
  }
  func.func @transform_4(%arg0: i32) -> (i32, i32) {
    %c0_i32 = arith.constant 0 : i32
    %c0_i32_0 = arith.constant 0 : i32
    %c0_i32_1 = arith.constant 0 : i32
    return %c0_i32, %c0_i32_0 : i32, i32
  }
  func.func @transform_5(%arg0: i32) -> (i32, i32) {
    %c0_i32 = arith.constant 0 : i32
    %c0_i32_0 = arith.constant 0 : i32
    %c0_i32_1 = arith.constant 0 : i32
    return %c0_i32, %c0_i32_0 : i32, i32
  }
  func.func @transform_6(%arg0: i32) -> (i32, i32) {
    %c0_i32 = arith.constant 0 : i32
    %c0_i32_0 = arith.constant 0 : i32
    %c0_i32_1 = arith.constant 0 : i32
    return %c0_i32, %c0_i32_0 : i32, i32
  }
  func.func @transform_7(%arg0: i32) -> (i32, i32) {
    %c0_i32 = arith.constant 0 : i32
    %c0_i32_0 = arith.constant 0 : i32
    %c0_i32_1 = arith.constant 0 : i32
    return %c0_i32, %c0_i32_0 : i32, i32
  }
}

</mosaic_0001>

<llo_original>
// kernel: qrdqn_forward.3
$region0: #{qrdqn_forward.3}
  #allocation0 [shape = 'u32[]', space=smem, size = 0x4, offset = 0x4, fixed_abs, tag = 'smem constant byte address 0x4 - core index']
  #allocation1 [shape = 'u32[144,128]{1,0:T(1,128)}', space=vmem, size = 0x12000, scoped, tag = 'internal scratch']
  %s0 = inlined_call_operand.vmem [shape: bf16[128,256], index: 0, kind: input, shape index: {}]
  %s1 = inlined_call_operand.vmem [shape: bf16[256,32], index: 1, kind: input, shape index: {}]
  %s2 = inlined_call_operand.vmem [shape: f32[1,32], index: 2, kind: input, shape index: {}]
  %s3 = inlined_call_operand.vmem [shape: bf16[128,32], index: 3, kind: output, shape index: {}]
  %s4 = sld [smem:[#allocation0]]
  $region22: #{qrdqn_forward.3} parent=0
    _
  %s6 = ssub.s32 1, %s4
  %s7 = scalar_select 0, %s6, %s4
  // Predicated region
  $region2: #{qrdqn_forward.3} parent=0 // pred_check
    _
  $region3: #{qrdqn_forward.3} parent=0 // pred_check_branch
    %9 = sbr.rel (0) target = $region5
  $region4: #{qrdqn_forward.3} parent=0 // pred_region
    _
  $region5: #{qrdqn_forward.3} parent=0 // pred_fallthru
    _
  // Predicated region
  $region6: #{qrdqn_forward.3} parent=0 // pred_check
    _
  $region7: #{qrdqn_forward.3} parent=0 // pred_check_branch
    %11 = sbr.rel (0) target = $region9
  $region8: #{qrdqn_forward.3} parent=0 // pred_region
    _
  $region9: #{qrdqn_forward.3} parent=0 // pred_fallthru
    _
  // Predicated region
  $region10: #{qrdqn_forward.3} parent=0 // pred_check
    _
  $region11: #{qrdqn_forward.3} parent=0 // pred_check_branch
    %13 = sbr.rel (0) target = $region13
  $region12: #{qrdqn_forward.3} parent=0 // pred_region
    _
  $region13: #{qrdqn_forward.3} parent=0 // pred_fallthru
    _
  %v15 = vld [vmem:[%s0] sm:$0xff]
  %v16 = vld [vmem:[%s0 + $0x8] sm:$0xff]
  %v17 = vld [vmem:[%s0 + $0x10] sm:$0xff]
  %v18 = vld [vmem:[%s0 + $0x18] sm:$0xff]
  %v19 = vld [vmem:[%s0 + $0x20] sm:$0xff]
  %v20 = vld [vmem:[%s0 + $0x28] sm:$0xff]
  %v21 = vld [vmem:[%s0 + $0x30] sm:$0xff]
  %v22 = vld [vmem:[%s0 + $0x38] sm:$0xff]
  %v23 = vld [vmem:[%s0 + $0x40] sm:$0xff]
  %v24 = vld [vmem:[%s0 + $0x48] sm:$0xff]
  %v25 = vld [vmem:[%s0 + $0x50] sm:$0xff]
  %v26 = vld [vmem:[%s0 + $0x58] sm:$0xff]
  %v27 = vld [vmem:[%s0 + $0x60] sm:$0xff]
  %v28 = vld [vmem:[%s0 + $0x68] sm:$0xff]
  %v29 = vld [vmem:[%s0 + $0x70] sm:$0xff]
  %v30 = vld [vmem:[%s0 + $0x78] sm:$0xff]
  %v31 = vld [vmem:[%s1] sm:$0xf]
  %v32 = vld [vmem:[%s1 + $0x4] sm:$0xf]
  %v33 = vld [vmem:[%s1 + $0x8] sm:$0xf]
  %v34 = vld [vmem:[%s1 + $0xc] sm:$0xf]
  %v35 = vld [vmem:[%s1 + $0x10] sm:$0xf]
  %v36 = vld [vmem:[%s1 + $0x14] sm:$0xf]
  %v37 = vld [vmem:[%s1 + $0x18] sm:$0xf]
  %v38 = vld [vmem:[%s1 + $0x1c] sm:$0xf]
  %v39 = vld [vmem:[%s1 + $0x20] sm:$0xf]
  %v40 = vld [vmem:[%s1 + $0x24] sm:$0xf]
  %v41 = vld [vmem:[%s1 + $0x28] sm:$0xf]
  %v42 = vld [vmem:[%s1 + $0x2c] sm:$0xf]
  %v43 = vld [vmem:[%s1 + $0x30] sm:$0xf]
  %v44 = vld [vmem:[%s1 + $0x34] sm:$0xf]
  %v45 = vld [vmem:[%s1 + $0x38] sm:$0xf]
  %v46 = vld [vmem:[%s1 + $0x3c] sm:$0xf]
  %v47 = vld [vmem:[%s1 + $0x40] sm:$0xf]
  %v48 = vld [vmem:[%s1 + $0x44] sm:$0xf]
  %v49 = vld [vmem:[%s1 + $0x48] sm:$0xf]
  %v50 = vld [vmem:[%s1 + $0x4c] sm:$0xf]
  %v51 = vld [vmem:[%s1 + $0x50] sm:$0xf]
  %v52 = vld [vmem:[%s1 + $0x54] sm:$0xf]
  %v53 = vld [vmem:[%s1 + $0x58] sm:$0xf]
  %v54 = vld [vmem:[%s1 + $0x5c] sm:$0xf]
  %v55 = vld [vmem:[%s1 + $0x60] sm:$0xf]
  %v56 = vld [vmem:[%s1 + $0x64] sm:$0xf]
  %v57 = vld [vmem:[%s1 + $0x68] sm:$0xf]
  %v58 = vld [vmem:[%s1 + $0x6c] sm:$0xf]
  %v59 = vld [vmem:[%s1 + $0x70] sm:$0xf]
  %v60 = vld [vmem:[%s1 + $0x74] sm:$0xf]
  %v61 = vld [vmem:[%s1 + $0x78] sm:$0xf]
  %v62 = vld [vmem:[%s1 + $0x7c] sm:$0xf]
  %v63 = vld [vmem:[%s2] sm:$0x1]
  %v65 = vlaneseq
  %v66 = vshrl.u32 %v65, 7
  %v67 = vsub.s32 0, %v66
  %v68 = vrot.slane %v63, %v67
  %v86 = vunpack.c.l.b16 %v15
  %v87 = vunpack.c.h.b16 %v15
  %v88 = vunpack.c.l.b16 %v16
  %v89 = vunpack.c.h.b16 %v16
  %v90 = vunpack.c.l.b16 %v17
  %v91 = vunpack.c.h.b16 %v17
  %v92 = vunpack.c.l.b16 %v18
  %v93 = vunpack.c.h.b16 %v18
  %v94 = vunpack.c.l.b16 %v19
  %v95 = vunpack.c.h.b16 %v19
  %v96 = vunpack.c.l.b16 %v20
  %v97 = vunpack.c.h.b16 %v20
  %v98 = vunpack.c.l.b16 %v21
  %v99 = vunpack.c.h.b16 %v21
  %v100 = vunpack.c.l.b16 %v22
  %v101 = vunpack.c.h.b16 %v22
  %v102 = vunpack.c.l.b16 %v23
  %v103 = vunpack.c.h.b16 %v23
  %v104 = vunpack.c.l.b16 %v24
  %v105 = vunpack.c.h.b16 %v24
  %v106 = vunpack.c.l.b16 %v25
  %v107 = vunpack.c.h.b16 %v25
  %v108 = vunpack.c.l.b16 %v26
  %v109 = vunpack.c.h.b16 %v26
  %v110 = vunpack.c.l.b16 %v27
  %v111 = vunpack.c.h.b16 %v27
  %v112 = vunpack.c.l.b16 %v28
  %v113 = vunpack.c.h.b16 %v28
  %v114 = vunpack.c.l.b16 %v29
  %v115 = vunpack.c.h.b16 %v29
  %v116 = vunpack.c.l.b16 %v30
  %v117 = vunpack.c.h.b16 %v30
  %v118 = vpack.c.b16 %v88, %v86
  %v119 = vpack.c.b16 %v89, %v87
  %v120 = vpack.c.b16 %v92, %v90
  %v121 = vpack.c.b16 %v93, %v91
  %v122 = vpack.c.b16 %v96, %v94
  %v123 = vpack.c.b16 %v97, %v95
  %v124 = vpack.c.b16 %v100, %v98
  %v125 = vpack.c.b16 %v101, %v99
  %v126 = vpack.c.b16 %v104, %v102
  %v127 = vpack.c.b16 %v105, %v103
  %v128 = vpack.c.b16 %v108, %v106
  %v129 = vpack.c.b16 %v109, %v107
  %v130 = vpack.c.b16 %v112, %v110
  %v131 = vpack.c.b16 %v113, %v111
  %v132 = vpack.c.b16 %v116, %v114
  %v133 = vpack.c.b16 %v117, %v115
  %v182 = vunpack.c.l.b16 %v31
  %v183 = vunpack.c.l.b16 %v32
  %v184 = vunpack.c.l.b16 %v33
  %v185 = vunpack.c.l.b16 %v34
  %v186 = vunpack.c.l.b16 %v35
  %v187 = vunpack.c.l.b16 %v36
  %v188 = vunpack.c.l.b16 %v37
  %v189 = vunpack.c.l.b16 %v38
  %v190 = vunpack.c.l.b16 %v39
  %v191 = vunpack.c.l.b16 %v40
  %v192 = vunpack.c.l.b16 %v41
  %v193 = vunpack.c.l.b16 %v42
  %v194 = vunpack.c.l.b16 %v43
  %v195 = vunpack.c.l.b16 %v44
  %v196 = vunpack.c.l.b16 %v45
  %v197 = vunpack.c.l.b16 %v46
  %v198 = vunpack.c.l.b16 %v47
  %v199 = vunpack.c.l.b16 %v48
  %v200 = vunpack.c.l.b16 %v49
  %v201 = vunpack.c.l.b16 %v50
  %v202 = vunpack.c.l.b16 %v51
  %v203 = vunpack.c.l.b16 %v52
  %v204 = vunpack.c.l.b16 %v53
  %v205 = vunpack.c.l.b16 %v54
  %v206 = vunpack.c.l.b16 %v55
  %v207 = vunpack.c.l.b16 %v56
  %v208 = vunpack.c.l.b16 %v57
  %v209 = vunpack.c.l.b16 %v58
  %v210 = vunpack.c.l.b16 %v59
  %v211 = vunpack.c.l.b16 %v60
  %v212 = vunpack.c.l.b16 %v61
  %v213 = vunpack.c.l.b16 %v62
  %v214 = vpack.c.b16 %v183, %v182
  %v215 = vpack.c.b16 %v185, %v184
  %v216 = vpack.c.b16 %v187, %v186
  %v217 = vpack.c.b16 %v189, %v188
  %v218 = vpack.c.b16 %v191, %v190
  %v219 = vpack.c.b16 %v193, %v192
  %v220 = vpack.c.b16 %v195, %v194
  %v221 = vpack.c.b16 %v197, %v196
  %v222 = vpack.c.b16 %v199, %v198
  %v223 = vpack.c.b16 %v201, %v200
  %v224 = vpack.c.b16 %v203, %v202
  %v225 = vpack.c.b16 %v205, %v204
  %v226 = vpack.c.b16 %v207, %v206
  %v227 = vpack.c.b16 %v209, %v208
  %v228 = vpack.c.b16 %v211, %v210
  %v229 = vpack.c.b16 %v213, %v212
  %246 = vmatprep.subr.bf16.mxu0 0
  %247 = vmatpush1.bf16.msra.mxu0 %v214
  %248 = vmatprep.subr.bf16.mxu0 0
  %249 = vmatpush1.bf16.msra.mxu0 %v215
  %250 = vmatprep.subr.bf16.mxu0 0
  %251 = vmatpush1.bf16.msra.mxu0 %v216
  %252 = vmatprep.subr.bf16.mxu0 0
  %253 = vmatpush1.bf16.msra.mxu0 %v217
  %254 = vmatprep.subr.bf16.mxu0 0
  %255 = vmatpush1.bf16.msra.mxu0 %v218
  %256 = vmatprep.subr.bf16.mxu0 0
  %257 = vmatpush1.bf16.msra.mxu0 %v219
  %258 = vmatprep.subr.bf16.mxu0 0
  %259 = vmatpush1.bf16.msra.mxu0 %v220
  %260 = vmatprep.subr.bf16.mxu0 0
  %261 = vmatpush1.bf16.msra.mxu0 %v221
  %262 = vmatprep.subr.bf16.mxu0 0
  %263 = vmatpush1.bf16.msra.mxu0 %v222
  %264 = vmatprep.subr.bf16.mxu0 0
  %265 = vmatpush1.bf16.msra.mxu0 %v223
  %266 = vmatprep.subr.bf16.mxu0 0
  %267 = vmatpush1.bf16.msra.mxu0 %v224
  %268 = vmatprep.subr.bf16.mxu0 0
  %269 = vmatpush1.bf16.msra.mxu0 %v225
  %270 = vmatprep.subr.bf16.mxu0 0
  %271 = vmatpush1.bf16.msra.mxu0 %v226
  %272 = vmatprep.subr.bf16.mxu0 0
  %273 = vmatpush1.bf16.msra.mxu0 %v227
  %274 = vmatprep.subr.bf16.mxu0 0
  %275 = vmatpush1.bf16.msra.mxu0 %v228
  %276 = vmatprep.subr.bf16.mxu0 0
  %277 = vmatpush1.bf16.msra.mxu0 %v229
  %278 = vmatprep.mubr.bf16.mxu0 %v119
  %279 = vmatmul.mubr.bf16.gmra.mrb[0].mxu0 %v118
  %v280 = vpop.f32.mrb[0].mxu0
  %v281 = vadd.f32 %v68, %v280
  %v282 = vpop.f32.mrb[0].mxu0
  %v283 = vpop.f32.mrb[0].mxu0
  %v284 = vadd.f32 %v68, %v283
  %v285 = vpop.f32.mrb[0].mxu0
  %286 = vmatprep.mubr.bf16.mxu0 %v121
  %287 = vmatmul.mubr.bf16.gmra.mrb[0].mxu0 %v120
  %v288 = vpop.f32.mrb[0].mxu0
  %v289 = vadd.f32 %v68, %v288
  %v290 = vpop.f32.mrb[0].mxu0
  %v291 = vpop.f32.mrb[0].mxu0
  %v292 = vadd.f32 %v68, %v291
  %v293 = vpop.f32.mrb[0].mxu0
  %294 = vmatprep.mubr.bf16.mxu0 %v123
  %295 = vmatmul.mubr.bf16.gmra.mrb[0].mxu0 %v122
  %v296 = vpop.f32.mrb[0].mxu0
  %v297 = vadd.f32 %v68, %v296
  %v298 = vpop.f32.mrb[0].mxu0
  %v299 = vpop.f32.mrb[0].mxu0
  %v300 = vadd.f32 %v68, %v299
  %v301 = vpop.f32.mrb[0].mxu0
  %302 = vmatprep.mubr.bf16.mxu0 %v125
  %303 = vmatmul.mubr.bf16.gmra.mrb[0].mxu0 %v124
  %v304 = vpop.f32.mrb[0].mxu0
  %v305 = vadd.f32 %v68, %v304
  %v306 = vpop.f32.mrb[0].mxu0
  %v307 = vpop.f32.mrb[0].mxu0
  %v308 = vadd.f32 %v68, %v307
  %v309 = vpop.f32.mrb[0].mxu0
  %310 = vmatprep.mubr.bf16.mxu0 %v127
  %311 = vmatmul.mubr.bf16.gmra.mrb[0].mxu0 %v126
  %v312 = vpop.f32.mrb[0].mxu0
  %v313 = vadd.f32 %v68, %v312
  %v314 = vpop.f32.mrb[0].mxu0
  %v315 = vpop.f32.mrb[0].mxu0
  %v316 = vadd.f32 %v68, %v315
  %v317 = vpop.f32.mrb[0].mxu0
  %318 = vmatprep.mubr.bf16.mxu0 %v129
  %319 = vmatmul.mubr.bf16.gmra.mrb[0].mxu0 %v128
  %v320 = vpop.f32.mrb[0].mxu0
  %v321 = vadd.f32 %v68, %v320
  %v322 = vpop.f32.mrb[0].mxu0
  %v323 = vpop.f32.mrb[0].mxu0
  %v324 = vadd.f32 %v68, %v323
  %v325 = vpop.f32.mrb[0].mxu0
  %326 = vmatprep.mubr.bf16.mxu0 %v131
  %327 = vmatmul.mubr.bf16.gmra.mrb[0].mxu0 %v130
  %v328 = vpop.f32.mrb[0].mxu0
  %v329 = vadd.f32 %v68, %v328
  %v330 = vpop.f32.mrb[0].mxu0
  %v331 = vpop.f32.mrb[0].mxu0
  %v332 = vadd.f32 %v68, %v331
  %v333 = vpop.f32.mrb[0].mxu0
  %334 = vmatprep.mubr.bf16.mxu0 %v133
  %335 = vmatmul.mubr.bf16.gmra.mrb[0].mxu0 %v132
  %v336 = vpop.f32.mrb[0].mxu0
  %v337 = vadd.f32 %v68, %v336
  %v338 = vpop.f32.mrb[0].mxu0
  %v339 = vpop.f32.mrb[0].mxu0
  %v340 = vadd.f32 %v68, %v339
  %v341 = vpop.f32.mrb[0].mxu0
  %342 = vdwg.mxu0
  %v343 = vmax.f32 %v281, 0.0
  %v344 = vmax.f32 %v284, 0.0
  %v345 = vmax.f32 %v289, 0.0
  %v346 = vmax.f32 %v292, 0.0
  %v347 = vmax.f32 %v297, 0.0
  %v348 = vmax.f32 %v300, 0.0
  %v349 = vmax.f32 %v305, 0.0
  %v350 = vmax.f32 %v308, 0.0
  %v351 = vmax.f32 %v313, 0.0
  %v352 = vmax.f32 %v316, 0.0
  %v353 = vmax.f32 %v321, 0.0
  %v354 = vmax.f32 %v324, 0.0
  %v355 = vmax.f32 %v329, 0.0
  %v356 = vmax.f32 %v332, 0.0
  %v357 = vmax.f32 %v337, 0.0
  %v358 = vmax.f32 %v340, 0.0
  %v359 = vpack.c.bf16 %v344, %v343
  %v360 = vpack.c.bf16 %v346, %v345
  %v361 = vpack.c.bf16 %v348, %v347
  %v362 = vpack.c.bf16 %v350, %v349
  %v363 = vpack.c.bf16 %v352, %v351
  %v364 = vpack.c.bf16 %v354, %v353
  %v365 = vpack.c.bf16 %v356, %v355
  %v366 = vpack.c.bf16 %v358, %v357
  %v375 = vunpack.c.l.b16 %v359
  %v376 = vunpack.c.h.b16 %v359
  %v377 = vunpack.c.l.b16 %v360
  %v378 = vunpack.c.h.b16 %v360
  %v379 = vunpack.c.l.b16 %v361
  %v380 = vunpack.c.h.b16 %v361
  %v381 = vunpack.c.l.b16 %v362
  %v382 = vunpack.c.h.b16 %v362
  %v383 = vunpack.c.l.b16 %v363
  %v384 = vunpack.c.h.b16 %v363
  %v385 = vunpack.c.l.b16 %v364
  %v386 = vunpack.c.h.b16 %v364
  %v387 = vunpack.c.l.b16 %v365
  %v388 = vunpack.c.h.b16 %v365
  %v389 = vunpack.c.l.b16 %v366
  %v390 = vunpack.c.h.b16 %v366
  %v391 = vpack.c.b16 %v375, %v375
  %v392 = vpack.c.b16 %v376, %v376
  %v393 = vpack.c.b16 %v377, %v377
  %v394 = vpack.c.b16 %v378, %v378
  %v395 = vpack.c.b16 %v379, %v379
  %v396 = vpack.c.b16 %v380, %v380
  %v397 = vpack.c.b16 %v381, %v381
  %v398 = vpack.c.b16 %v382, %v382
  %v399 = vpack.c.b16 %v383, %v383
  %v400 = vpack.c.b16 %v384, %v384
  %v401 = vpack.c.b16 %v385, %v385
  %v402 = vpack.c.b16 %v386, %v386
  %v403 = vpack.c.b16 %v387, %v387
  %v404 = vpack.c.b16 %v388, %v388
  %v405 = vpack.c.b16 %v389, %v389
  %v406 = vpack.c.b16 %v390, %v390
  %vm423 = vcmask 257024
  %424 = vst.msk [vmem:[%s3] sm:$0xf] %vm423, %v391
  %425 = vst.msk [vmem:[%s3 + $0x4] sm:$0xf] %vm423, %v392
  %426 = vst.msk [vmem:[%s3 + $0x8] sm:$0xf] %vm423, %v393
  %427 = vst.msk [vmem:[%s3 + $0xc] sm:$0xf] %vm423, %v394
  %428 = vst.msk [vmem:[%s3 + $0x10] sm:$0xf] %vm423, %v395
  %429 = vst.msk [vmem:[%s3 + $0x14] sm:$0xf] %vm423, %v396
  %430 = vst.msk [vmem:[%s3 + $0x18] sm:$0xf] %vm423, %v397
  %431 = vst.msk [vmem:[%s3 + $0x1c] sm:$0xf] %vm423, %v398
  %432 = vst.msk [vmem:[%s3 + $0x20] sm:$0xf] %vm423, %v399
  %433 = vst.msk [vmem:[%s3 + $0x24] sm:$0xf] %vm423, %v400
  %434 = vst.msk [vmem:[%s3 + $0x28] sm:$0xf] %vm423, %v401
  %435 = vst.msk [vmem:[%s3 + $0x2c] sm:$0xf] %vm423, %v402
  %436 = vst.msk [vmem:[%s3 + $0x30] sm:$0xf] %vm423, %v403
  %437 = vst.msk [vmem:[%s3 + $0x34] sm:$0xf] %vm423, %v404
  %438 = vst.msk [vmem:[%s3 + $0x38] sm:$0xf] %vm423, %v405
  %439 = vst.msk [vmem:[%s3 + $0x3c] sm:$0xf] %vm423, %v406
  // Predicated region
  $region14: #{qrdqn_forward.3} parent=0 // pred_check
    _
  $region15: #{qrdqn_forward.3} parent=0 // pred_check_branch
    %441 = sbr.rel (0) target = $region17
  $region16: #{qrdqn_forward.3} parent=0 // pred_region
    _
  $region17: #{qrdqn_forward.3} parent=0 // pred_fallthru
    _
  // Predicated region
  $region18: #{qrdqn_forward.3} parent=0 // pred_check
    _
  $region19: #{qrdqn_forward.3} parent=0 // pred_check_branch
    %443 = sbr.rel (0) target = $region21
  $region20: #{qrdqn_forward.3} parent=0 // pred_region
    _
  $region21: #{qrdqn_forward.3} parent=0 // pred_fallthru
    _

// kernel: qrdqn_forward.4
$region0: #{qrdqn_forward.4}
  #allocation0 [shape = 'u32[]', space=smem, size = 0x4, offset = 0x4, fixed_abs, tag = 'smem constant byte address 0x4 - core index']
  #allocation1 [shape = 'u32[144,128]{1,0:T(1,128)}', space=vmem, size = 0x12000, scoped, tag = 'internal scratch']
  %s0 = inlined_call_operand.vmem [shape: bf16[18,512], index: 0, kind: input, shape index: {}]
  %s1 = inlined_call_operand.vmem [shape: bf16[512,64], index: 1, kind: input, shape index: {}]
  %s2 = inlined_call_operand.vmem [shape: f32[1,64], index: 2, kind: input, shape index: {}]
  %s3 = inlined_call_operand.vmem [shape: bf16[18,64], index: 3, kind: output, shape index: {}]
  %s4 = sld [smem:[#allocation0]]
  $region22: #{qrdqn_forward.4} parent=0
    _
  %s6 = ssub.s32 1, %s4
  %s7 = scalar_select 0, %s6, %s4
  // Predicated region
  $region2: #{qrdqn_forward.4} parent=0 // pred_check
    _
  $region3: #{qrdqn_forward.4} parent=0 // pred_check_branch
    %9 = sbr.rel (0) target = $region5
  $region4: #{qrdqn_forward.4} parent=0 // pred_region
    _
  $region5: #{qrdqn_forward.4} parent=0 // pred_fallthru
    _
  // Predicated region
  $region6: #{qrdqn_forward.4} parent=0 // pred_check
    _
  $region7: #{qrdqn_forward.4} parent=0 // pred_check_branch
    %11 = sbr.rel (0) target = $region9
  $region8: #{qrdqn_forward.4} parent=0 // pred_region
    _
  $region9: #{qrdqn_forward.4} parent=0 // pred_fallthru
    _
  // Predicated region
  $region10: #{qrdqn_forward.4} parent=0 // pred_check
    _
  $region11: #{qrdqn_forward.4} parent=0 // pred_check_branch
    %13 = sbr.rel (0) target = $region13
  $region12: #{qrdqn_forward.4} parent=0 // pred_region
    _
  $region13: #{qrdqn_forward.4} parent=0 // pred_fallthru
    _
  %v15 = vld [vmem:[%s0] sm:$0xff]
  %v16 = vld [vmem:[%s0 + $0x8] sm:$0xff]
  %v17 = vld [vmem:[%s0 + $0x10] sm:$0xff]
  %v18 = vld [vmem:[%s0 + $0x18] sm:$0xff]
  %v19 = vld [vmem:[%s0 + $0x20] sm:$0x11]
  %v20 = vld [vmem:[%s0 + $0x28] sm:$0x11]
  %v21 = vld [vmem:[%s1] sm:$0xf]
  %v22 = vld [vmem:[%s1 + $0x4] sm:$0xf]
  %v23 = vld [vmem:[%s1 + $0x8] sm:$0xf]
  %v24 = vld [vmem:[%s1 + $0xc] sm:$0xf]
  %v25 = vld [vmem:[%s1 + $0x10] sm:$0xf]
  %v26 = vld [vmem:[%s1 + $0x14] sm:$0xf]
  %v27 = vld [vmem:[%s1 + $0x18] sm:$0xf]
  %v28 = vld [vmem:[%s1 + $0x1c] sm:$0xf]
  %v29 = vld [vmem:[%s1 + $0x20] sm:$0xf]
  %v30 = vld [vmem:[%s1 + $0x24] sm:$0xf]
  %v31 = vld [vmem:[%s1 + $0x28] sm:$0xf]
  %v32 = vld [vmem:[%s1 + $0x2c] sm:$0xf]
  %v33 = vld [vmem:[%s1 + $0x30] sm:$0xf]
  %v34 = vld [vmem:[%s1 + $0x34] sm:$0xf]
  %v35 = vld [vmem:[%s1 + $0x38] sm:$0xf]
  %v36 = vld [vmem:[%s1 + $0x3c] sm:$0xf]
  %v37 = vld [vmem:[%s1 + $0x40] sm:$0xf]
  %v38 = vld [vmem:[%s1 + $0x44] sm:$0xf]
  %v39 = vld [vmem:[%s1 + $0x48] sm:$0xf]
  %v40 = vld [vmem:[%s1 + $0x4c] sm:$0xf]
  %v41 = vld [vmem:[%s1 + $0x50] sm:$0xf]
  %v42 = vld [vmem:[%s1 + $0x54] sm:$0xf]
  %v43 = vld [vmem:[%s1 + $0x58] sm:$0xf]
  %v44 = vld [vmem:[%s1 + $0x5c] sm:$0xf]
  %v45 = vld [vmem:[%s1 + $0x60] sm:$0xf]
  %v46 = vld [vmem:[%s1 + $0x64] sm:$0xf]
  %v47 = vld [vmem:[%s1 + $0x68] sm:$0xf]
  %v48 = vld [vmem:[%s1 + $0x6c] sm:$0xf]
  %v49 = vld [vmem:[%s1 + $0x70] sm:$0xf]
  %v50 = vld [vmem:[%s1 + $0x74] sm:$0xf]
  %v51 = vld [vmem:[%s1 + $0x78] sm:$0xf]
  %v52 = vld [vmem:[%s1 + $0x7c] sm:$0xf]
  %v53 = vld [vmem:[%s1 + $0x80] sm:$0xf]
  %v54 = vld [vmem:[%s1 + $0x84] sm:$0xf]
  %v55 = vld [vmem:[%s1 + $0x88] sm:$0xf]
  %v56 = vld [vmem:[%s1 + $0x8c] sm:$0xf]
  %v57 = vld [vmem:[%s1 + $0x90] sm:$0xf]
  %v58 = vld [vmem:[%s1 + $0x94] sm:$0xf]
  %v59 = vld [vmem:[%s1 + $0x98] sm:$0xf]
  %v60 = vld [vmem:[%s1 + $0x9c] sm:$0xf]
  %v61 = vld [vmem:[%s1 + $0xa0] sm:$0xf]
  %v62 = vld [vmem:[%s1 + $0xa4] sm:$0xf]
  %v63 = vld [vmem:[%s1 + $0xa8] sm:$0xf]
  %v64 = vld [vmem:[%s1 + $0xac] sm:$0xf]
  %v65 = vld [vmem:[%s1 + $0xb0] sm:$0xf]
  %v66 = vld [vmem:[%s1 + $0xb4] sm:$0xf]
  %v67 = vld [vmem:[%s1 + $0xb8] sm:$0xf]
  %v68 = vld [vmem:[%s1 + $0xbc] sm:$0xf]
  %v69 = vld [vmem:[%s1 + $0xc0] sm:$0xf]
  %v70 = vld [vmem:[%s1 + $0xc4] sm:$0xf]
  %v71 = vld [vmem:[%s1 + $0xc8] sm:$0xf]
  %v72 = vld [vmem:[%s1 + $0xcc] sm:$0xf]
  %v73 = vld [vmem:[%s1 + $0xd0] sm:$0xf]
  %v74 = vld [vmem:[%s1 + $0xd4] sm:$0xf]
  %v75 = vld [vmem:[%s1 + $0xd8] sm:$0xf]
  %v76 = vld [vmem:[%s1 + $0xdc] sm:$0xf]
  %v77 = vld [vmem:[%s1 + $0xe0] sm:$0xf]
  %v78 = vld [vmem:[%s1 + $0xe4] sm:$0xf]
  %v79 = vld [vmem:[%s1 + $0xe8] sm:$0xf]
  %v80 = vld [vmem:[%s1 + $0xec] sm:$0xf]
  %v81 = vld [vmem:[%s1 + $0xf0] sm:$0xf]
  %v82 = vld [vmem:[%s1 + $0xf4] sm:$0xf]
  %v83 = vld [vmem:[%s1 + $0xf8] sm:$0xf]
  %v84 = vld [vmem:[%s1 + $0xfc] sm:$0xf]
  %v85 = vld [vmem:[%s2] sm:$0x1]
  %v87 = vlaneseq
  %v88 = vshrl.u32 %v87, 7
  %v89 = vsub.s32 0, %v88
  %v90 = vrot.slane %v85, %v89
  %v98 = vunpack.c.l.b16 %v15
  %v99 = vunpack.c.h.b16 %v15
  %v100 = vunpack.c.l.b16 %v16
  %v101 = vunpack.c.h.b16 %v16
  %v102 = vunpack.c.l.b16 %v17
  %v103 = vunpack.c.h.b16 %v17
  %v104 = vunpack.c.l.b16 %v18
  %v105 = vunpack.c.h.b16 %v18
  %v106 = vunpack.c.l.b16 %v19
  %v107 = vunpack.c.h.b16 %v19
  %v108 = vunpack.c.l.b16 %v20
  %v109 = vunpack.c.h.b16 %v20
  %v110 = vpack.c.b16 %v102, %v98
  %v111 = vpack.c.b16 %v103, %v99
  %v112 = vpack.c.b16 %v104, %v100
  %v113 = vpack.c.b16 %v105, %v101
  %v114 = vpack.c.b16 %v106, %v106
  %v115 = vpack.c.b16 %v107, %v107
  %v116 = vpack.c.b16 %v108, %v108
  %v117 = vpack.c.b16 %v109, %v109
  %v190 = vunpack.c.l.b16 %v21
  %v191 = vunpack.c.l.b16 %v22
  %v192 = vunpack.c.l.b16 %v23
  %v193 = vunpack.c.l.b16 %v24
  %v194 = vunpack.c.l.b16 %v25
  %v195 = vunpack.c.l.b16 %v26
  %v196 = vunpack.c.l.b16 %v27
  %v197 = vunpack.c.l.b16 %v28
  %v198 = vunpack.c.l.b16 %v29
  %v199 = vunpack.c.l.b16 %v30
  %v200 = vunpack.c.l.b16 %v31
  %v201 = vunpack.c.l.b16 %v32
  %v202 = vunpack.c.l.b16 %v33
  %v203 = vunpack.c.l.b16 %v34
  %v204 = vunpack.c.l.b16 %v35
  %v205 = vunpack.c.l.b16 %v36
  %v206 = vunpack.c.l.b16 %v37
  %v207 = vunpack.c.l.b16 %v38
  %v208 = vunpack.c.l.b16 %v39
  %v209 = vunpack.c.l.b16 %v40
  %v210 = vunpack.c.l.b16 %v41
  %v211 = vunpack.c.l.b16 %v42
  %v212 = vunpack.c.l.b16 %v43
  %v213 = vunpack.c.l.b16 %v44
  %v214 = vunpack.c.l.b16 %v45
  %v215 = vunpack.c.l.b16 %v46
  %v216 = vunpack.c.l.b16 %v47
  %v217 = vunpack.c.l.b16 %v48
  %v218 = vunpack.c.l.b16 %v49
  %v219 = vunpack.c.l.b16 %v50
  %v220 = vunpack.c.l.b16 %v51
  %v221 = vunpack.c.l.b16 %v52
  %v222 = vunpack.c.l.b16 %v53
  %v223 = vunpack.c.l.b16 %v54
  %v224 = vunpack.c.l.b16 %v55
  %v225 = vunpack.c.l.b16 %v56
  %v226 = vunpack.c.l.b16 %v57
  %v227 = vunpack.c.l.b16 %v58
  %v228 = vunpack.c.l.b16 %v59
  %v229 = vunpack.c.l.b16 %v60
  %v230 = vunpack.c.l.b16 %v61
  %v231 = vunpack.c.l.b16 %v62
  %v232 = vunpack.c.l.b16 %v63
  %v233 = vunpack.c.l.b16 %v64
  %v234 = vunpack.c.l.b16 %v65
  %v235 = vunpack.c.l.b16 %v66
  %v236 = vunpack.c.l.b16 %v67
  %v237 = vunpack.c.l.b16 %v68
  %v238 = vunpack.c.l.b16 %v69
  %v239 = vunpack.c.l.b16 %v70
  %v240 = vunpack.c.l.b16 %v71
  %v241 = vunpack.c.l.b16 %v72
  %v242 = vunpack.c.l.b16 %v73
  %v243 = vunpack.c.l.b16 %v74
  %v244 = vunpack.c.l.b16 %v75
  %v245 = vunpack.c.l.b16 %v76
  %v246 = vunpack.c.l.b16 %v77
  %v247 = vunpack.c.l.b16 %v78
  %v248 = vunpack.c.l.b16 %v79
  %v249 = vunpack.c.l.b16 %v80
  %v250 = vunpack.c.l.b16 %v81
  %v251 = vunpack.c.l.b16 %v82
  %v252 = vunpack.c.l.b16 %v83
  %v253 = vunpack.c.l.b16 %v84
  %v254 = vpack.c.b16 %v191, %v190
  %v255 = vpack.c.b16 %v193, %v192
  %v256 = vpack.c.b16 %v195, %v194
  %v257 = vpack.c.b16 %v197, %v196
  %v258 = vpack.c.b16 %v199, %v198
  %v259 = vpack.c.b16 %v201, %v200
  %v260 = vpack.c.b16 %v203, %v202
  %v261 = vpack.c.b16 %v205, %v204
  %v262 = vpack.c.b16 %v207, %v206
  %v263 = vpack.c.b16 %v209, %v208
  %v264 = vpack.c.b16 %v211, %v210
  %v265 = vpack.c.b16 %v213, %v212
  %v266 = vpack.c.b16 %v215, %v214
  %v267 = vpack.c.b16 %v217, %v216
  %v268 = vpack.c.b16 %v219, %v218
  %v269 = vpack.c.b16 %v221, %v220
  %v270 = vpack.c.b16 %v223, %v222
  %v271 = vpack.c.b16 %v225, %v224
  %v272 = vpack.c.b16 %v227, %v226
  %v273 = vpack.c.b16 %v229, %v228
  %v274 = vpack.c.b16 %v231, %v230
  %v275 = vpack.c.b16 %v233, %v232
  %v276 = vpack.c.b16 %v235, %v234
  %v277 = vpack.c.b16 %v237, %v236
  %v278 = vpack.c.b16 %v239, %v238
  %v279 = vpack.c.b16 %v241, %v240
  %v280 = vpack.c.b16 %v243, %v242
  %v281 = vpack.c.b16 %v245, %v244
  %v282 = vpack.c.b16 %v247, %v246
  %v283 = vpack.c.b16 %v249, %v248
  %v284 = vpack.c.b16 %v251, %v250
  %v285 = vpack.c.b16 %v253, %v252
  %318 = vmatprep.subr.bf16.mxu0 0
  %319 = vmatpush1.bf16.msra.mxu0 %v254
  %320 = vmatprep.subr.bf16.mxu0 0
  %321 = vmatpush1.bf16.msra.mxu0 %v255
  %322 = vmatprep.subr.bf16.mxu0 0
  %323 = vmatpush1.bf16.msra.mxu0 %v256
  %324 = vmatprep.subr.bf16.mxu0 0
  %325 = vmatpush1.bf16.msra.mxu0 %v257
  %326 = vmatprep.subr.bf16.mxu0 0
  %327 = vmatpush1.bf16.msra.mxu0 %v258
  %328 = vmatprep.subr.bf16.mxu0 0
  %329 = vmatpush1.bf16.msra.mxu0 %v259
  %330 = vmatprep.subr.bf16.mxu0 0
  %331 = vmatpush1.bf16.msra.mxu0 %v260
  %332 = vmatprep.subr.bf16.mxu0 0
  %333 = vmatpush1.bf16.msra.mxu0 %v261
  %334 = vmatprep.subr.bf16.mxu0 0
  %335 = vmatpush1.bf16.msra.mxu0 %v262
  %336 = vmatprep.subr.bf16.mxu0 0
  %337 = vmatpush1.bf16.msra.mxu0 %v263
  %338 = vmatprep.subr.bf16.mxu0 0
  %339 = vmatpush1.bf16.msra.mxu0 %v264
  %340 = vmatprep.subr.bf16.mxu0 0
  %341 = vmatpush1.bf16.msra.mxu0 %v265
  %342 = vmatprep.subr.bf16.mxu0 0
  %343 = vmatpush1.bf16.msra.mxu0 %v266
  %344 = vmatprep.subr.bf16.mxu0 0
  %345 = vmatpush1.bf16.msra.mxu0 %v267
  %346 = vmatprep.subr.bf16.mxu0 0
  %347 = vmatpush1.bf16.msra.mxu0 %v268
  %348 = vmatprep.subr.bf16.mxu0 0
  %349 = vmatpush1.bf16.msra.mxu0 %v269
  %350 = vmatprep.mubr.bf16.mxu0 %v111
  %351 = vmatmul.mubr.bf16.gmra.mrb[0].mxu0 %v110
  %v352 = vpop.f32.mrb[0].mxu0
  %v353 = vadd.f32 %v90, %v352
  %v354 = vpop.f32.mrb[0].mxu0
  %v355 = vpop.f32.mrb[0].mxu0
  %v356 = vadd.f32 %v90, %v355
  %v357 = vpop.f32.mrb[0].mxu0
  %358 = vmatprep.mubr.bf16.mxu0 %v115
  %359 = vmatmul.mubr.bf16.gmra.mrb[0].mxu0 %v114
  %v360 = vpop.f32.mrb[0].mxu0
  %v361 = vadd.f32 %v90, %v360
  %v362 = vpop.f32.mrb[0].mxu0
  %v363 = vpop.f32.mrb[0].mxu0
  %v364 = vpop.f32.mrb[0].mxu0
  %365 = vdwg.mxu0
  %366 = vmatprep.subr.bf16.mxu0 0
  %367 = vmatpush1.bf16.msra.mxu0 %v270
  %368 = vmatprep.subr.bf16.mxu0 0
  %369 = vmatpush1.bf16.msra.mxu0 %v271
  %370 = vmatprep.subr.bf16.mxu0 0
  %371 = vmatpush1.bf16.msra.mxu0 %v272
  %372 = vmatprep.subr.bf16.mxu0 0
  %373 = vmatpush1.bf16.msra.mxu0 %v273
  %374 = vmatprep.subr.bf16.mxu0 0
  %375 = vmatpush1.bf16.msra.mxu0 %v274
  %376 = vmatprep.subr.bf16.mxu0 0
  %377 = vmatpush1.bf16.msra.mxu0 %v275
  %378 = vmatprep.subr.bf16.mxu0 0
  %379 = vmatpush1.bf16.msra.mxu0 %v276
  %380 = vmatprep.subr.bf16.mxu0 0
  %381 = vmatpush1.bf16.msra.mxu0 %v277
  %382 = vmatprep.subr.bf16.mxu0 0
  %383 = vmatpush1.bf16.msra.mxu0 %v278
  %384 = vmatprep.subr.bf16.mxu0 0
  %385 = vmatpush1.bf16.msra.mxu0 %v279
  %386 = vmatprep.subr.bf16.mxu0 0
  %387 = vmatpush1.bf16.msra.mxu0 %v280
  %388 = vmatprep.subr.bf16.mxu0 0
  %389 = vmatpush1.bf16.msra.mxu0 %v281
  %390 = vmatprep.subr.bf16.mxu0 0
  %391 = vmatpush1.bf16.msra.mxu0 %v282
  %392 = vmatprep.subr.bf16.mxu0 0
  %393 = vmatpush1.bf16.msra.mxu0 %v283
  %394 = vmatprep.subr.bf16.mxu0 0
  %395 = vmatpush1.bf16.msra.mxu0 %v284
  %396 = vmatprep.subr.bf16.mxu0 0
  %397 = vmatpush1.bf16.msra.mxu0 %v285
  %398 = vmatprep.mubr.bf16.mxu0 %v113
  %399 = vmatmul.mubr.bf16.gmra.mrb[0].mxu0 %v112
  %v400 = vpop.f32.mrb[0].mxu0
  %v401 = vadd.f32 %v353, %v400
  %v402 = vpop.f32.mrb[0].mxu0
  %v403 = vpop.f32.mrb[0].mxu0
  %v404 = vadd.f32 %v356, %v403
  %v405 = vpop.f32.mrb[0].mxu0
  %406 = vmatprep.mubr.bf16.mxu0 %v117
  %407 = vmatmul.mubr.bf16.gmra.mrb[0].mxu0 %v116
  %v408 = vpop.f32.mrb[0].mxu0
  %v409 = vadd.f32 %v361, %v408
  %v410 = vpop.f32.mrb[0].mxu0
  %v411 = vpop.f32.mrb[0].mxu0
  %v412 = vpop.f32.mrb[0].mxu0
  %413 = vdwg.mxu0
  %v414 = vmax.f32 %v401, 0.0
  %v415 = vmax.f32 %v404, 0.0
  %v416 = vmax.f32 %v409, 0.0
  %v417 = vpack.c.bf16 %v415, %v414
  %v418 = vpack.c.bf16 %v416, %v416
  %v421 = vunpack.c.l.b16 %v417
  %v422 = vunpack.c.h.b16 %v417
  %v423 = vunpack.c.l.b16 %v418
  %v424 = vpack.c.b16 %v421, %v421
  %v425 = vpack.c.b16 %v422, %v422
  %v426 = vpack.c.b16 %v423, %v423
  %vm430 = vcmask 519168
  %431 = vst.msk [vmem:[%s3] sm:$0xf] %vm430, %v424
  %432 = vst.msk [vmem:[%s3 + $0x4] sm:$0xf] %vm430, %v425
  %vm433 = vcmask 516096
  %434 = vst.msk [vmem:[%s3 + $0x8] sm:$0x1] %vm433, %v426
  // Predicated region
  $region14: #{qrdqn_forward.4} parent=0 // pred_check
    _
  $region15: #{qrdqn_forward.4} parent=0 // pred_check_branch
    %436 = sbr.rel (0) target = $region17
  $region16: #{qrdqn_forward.4} parent=0 // pred_region
    _
  $region17: #{qrdqn_forward.4} parent=0 // pred_fallthru
    _
  // Predicated region
  $region18: #{qrdqn_forward.4} parent=0 // pred_check
    _
  $region19: #{qrdqn_forward.4} parent=0 // pred_check_branch
    %438 = sbr.rel (0) target = $region21
  $region20: #{qrdqn_forward.4} parent=0 // pred_region
    _
  $region21: #{qrdqn_forward.4} parent=0 // pred_fallthru
    _

// kernel: qrdqn_forward.5
$region0: #{qrdqn_forward.5}
  #allocation0 [shape = 'u32[]', space=smem, size = 0x4, offset = 0x4, fixed_abs, tag = 'smem constant byte address 0x4 - core index']
  #allocation1 [shape = 'u32[144,128]{1,0:T(1,128)}', space=vmem, size = 0x12000, scoped, tag = 'internal scratch']
  %s0 = inlined_call_operand.vmem [shape: bf16[2,576], index: 0, kind: input, shape index: {}]
  %s1 = inlined_call_operand.vmem [shape: bf16[576,64], index: 1, kind: input, shape index: {}]
  %s2 = inlined_call_operand.vmem [shape: f32[1,64], index: 2, kind: input, shape index: {}]
  %s3 = inlined_call_operand.vmem [shape: bf16[64,512], index: 3, kind: input, shape index: {}]
  %s4 = inlined_call_operand.vmem [shape: f32[1,512], index: 4, kind: input, shape index: {}]
  %s5 = inlined_call_operand.vmem [shape: bf16[512,96], index: 5, kind: input, shape index: {}]
  %s6 = inlined_call_operand.vmem [shape: f32[1,96], index: 6, kind: input, shape index: {}]
  %s7 = inlined_call_operand.vmem [shape: f32[2,96], index: 7, kind: output, shape index: {}]
  %s8 = sld [smem:[#allocation0]]
  $region38: #{qrdqn_forward.5} parent=0
    _
  %s10 = ssub.s32 1, %s8
  %s11 = scalar_select 0, %s10, %s8
  // Predicated region
  $region2: #{qrdqn_forward.5} parent=0 // pred_check
    _
  $region3: #{qrdqn_forward.5} parent=0 // pred_check_branch
    %13 = sbr.rel (0) target = $region5
  $region4: #{qrdqn_forward.5} parent=0 // pred_region
    _
  $region5: #{qrdqn_forward.5} parent=0 // pred_fallthru
    _
  // Predicated region
  $region6: #{qrdqn_forward.5} parent=0 // pred_check
    _
  $region7: #{qrdqn_forward.5} parent=0 // pred_check_branch
    %15 = sbr.rel (0) target = $region9
  $region8: #{qrdqn_forward.5} parent=0 // pred_region
    _
  $region9: #{qrdqn_forward.5} parent=0 // pred_fallthru
    _
  // Predicated region
  $region10: #{qrdqn_forward.5} parent=0 // pred_check
    _
  $region11: #{qrdqn_forward.5} parent=0 // pred_check_branch
    %17 = sbr.rel (0) target = $region13
  $region12: #{qrdqn_forward.5} parent=0 // pred_region
    _
  $region13: #{qrdqn_forward.5} parent=0 // pred_fallthru
    _
  // Predicated region
  $region14: #{qrdqn_forward.5} parent=0 // pred_check
    _
  $region15: #{qrdqn_forward.5} parent=0 // pred_check_branch
    %19 = sbr.rel (0) target = $region17
  $region16: #{qrdqn_forward.5} parent=0 // pred_region
    _
  $region17: #{qrdqn_forward.5} parent=0 // pred_fallthru
    _
  // Predicated region
  $region18: #{qrdqn_forward.5} parent=0 // pred_check
    _
  $region19: #{qrdqn_forward.5} parent=0 // pred_check_branch
    %21 = sbr.rel (0) target = $region21
  $region20: #{qrdqn_forward.5} parent=0 // pred_region
    _
  $region21: #{qrdqn_forward.5} parent=0 // pred_fallthru
    _
  // Predicated region
  $region22: #{qrdqn_forward.5} parent=0 // pred_check
    _
  $region23: #{qrdqn_forward.5} parent=0 // pred_check_branch
    %23 = sbr.rel (0) target = $region25
  $region24: #{qrdqn_forward.5} parent=0 // pred_region
    _
  $region25: #{qrdqn_forward.5} parent=0 // pred_fallthru
    _
  // Predicated region
  $region26: #{qrdqn_forward.5} parent=0 // pred_check
    _
  $region27: #{qrdqn_forward.5} parent=0 // pred_check_branch
    %25 = sbr.rel (0) target = $region29
  $region28: #{qrdqn_forward.5} parent=0 // pred_region
    _
  $region29: #{qrdqn_forward.5} parent=0 // pred_fallthru
    _
  %v27 = vld [vmem:[%s0] sm:$0x1f]
  %v28 = vld [vmem:[%s1] sm:$0xf]
  %v29 = vld [vmem:[%s1 + $0x4] sm:$0xf]
  %v30 = vld [vmem:[%s1 + $0x8] sm:$0xf]
  %v31 = vld [vmem:[%s1 + $0xc] sm:$0xf]
  %v32 = vld [vmem:[%s1 + $0x10] sm:$0xf]
  %v33 = vld [vmem:[%s1 + $0x14] sm:$0xf]
  %v34 = vld [vmem:[%s1 + $0x18] sm:$0xf]
  %v35 = vld [vmem:[%s1 + $0x1c] sm:$0xf]
  %v36 = vld [vmem:[%s1 + $0x20] sm:$0xf]
  %v37 = vld [vmem:[%s1 + $0x24] sm:$0xf]
  %v38 = vld [vmem:[%s1 + $0x28] sm:$0xf]
  %v39 = vld [vmem:[%s1 + $0x2c] sm:$0xf]
  %v40 = vld [vmem:[%s1 + $0x30] sm:$0xf]
  %v41 = vld [vmem:[%s1 + $0x34] sm:$0xf]
  %v42 = vld [vmem:[%s1 + $0x38] sm:$0xf]
  %v43 = vld [vmem:[%s1 + $0x3c] sm:$0xf]
  %v44 = vld [vmem:[%s1 + $0x40] sm:$0xf]
  %v45 = vld [vmem:[%s1 + $0x44] sm:$0xf]
  %v46 = vld [vmem:[%s1 + $0x48] sm:$0xf]
  %v47 = vld [vmem:[%s1 + $0x4c] sm:$0xf]
  %v48 = vld [vmem:[%s1 + $0x50] sm:$0xf]
  %v49 = vld [vmem:[%s1 + $0x54] sm:$0xf]
  %v50 = vld [vmem:[%s1 + $0x58] sm:$0xf]
  %v51 = vld [vmem:[%s1 + $0x5c] sm:$0xf]
  %v52 = vld [vmem:[%s1 + $0x60] sm:$0xf]
  %v53 = vld [vmem:[%s1 + $0x64] sm:$0xf]
  %v54 = vld [vmem:[%s1 + $0x68] sm:$0xf]
  %v55 = vld [vmem:[%s1 + $0x6c] sm:$0xf]
  %v56 = vld [vmem:[%s1 + $0x70] sm:$0xf]
  %v57 = vld [vmem:[%s1 + $0x74] sm:$0xf]
  %v58 = vld [vmem:[%s1 + $0x78] sm:$0xf]
  %v59 = vld [vmem:[%s1 + $0x7c] sm:$0xf]
  %v60 = vld [vmem:[%s1 + $0x80] sm:$0xf]
  %v61 = vld [vmem:[%s1 + $0x84] sm:$0xf]
  %v62 = vld [vmem:[%s1 + $0x88] sm:$0xf]
  %v63 = vld [vmem:[%s1 + $0x8c] sm:$0xf]
  %v64 = vld [vmem:[%s1 + $0x90] sm:$0xf]
  %v65 = vld [vmem:[%s1 + $0x94] sm:$0xf]
  %v66 = vld [vmem:[%s1 + $0x98] sm:$0xf]
  %v67 = vld [vmem:[%s1 + $0x9c] sm:$0xf]
  %v68 = vld [vmem:[%s1 + $0xa0] sm:$0xf]
  %v69 = vld [vmem:[%s1 + $0xa4] sm:$0xf]
  %v70 = vld [vmem:[%s1 + $0xa8] sm:$0xf]
  %v71 = vld [vmem:[%s1 + $0xac] sm:$0xf]
  %v72 = vld [vmem:[%s1 + $0xb0] sm:$0xf]
  %v73 = vld [vmem:[%s1 + $0xb4] sm:$0xf]
  %v74 = vld [vmem:[%s1 + $0xb8] sm:$0xf]
  %v75 = vld [vmem:[%s1 + $0xbc] sm:$0xf]
  %v76 = vld [vmem:[%s1 + $0xc0] sm:$0xf]
  %v77 = vld [vmem:[%s1 + $0xc4] sm:$0xf]
  %v78 = vld [vmem:[%s1 + $0xc8] sm:$0xf]
  %v79 = vld [vmem:[%s1 + $0xcc] sm:$0xf]
  %v80 = vld [vmem:[%s1 + $0xd0] sm:$0xf]
  %v81 = vld [vmem:[%s1 + $0xd4] sm:$0xf]
  %v82 = vld [vmem:[%s1 + $0xd8] sm:$0xf]
  %v83 = vld [vmem:[%s1 + $0xdc] sm:$0xf]
  %v84 = vld [vmem:[%s1 + $0xe0] sm:$0xf]
  %v85 = vld [vmem:[%s1 + $0xe4] sm:$0xf]
  %v86 = vld [vmem:[%s1 + $0xe8] sm:$0xf]
  %v87 = vld [vmem:[%s1 + $0xec] sm:$0xf]
  %v88 = vld [vmem:[%s1 + $0xf0] sm:$0xf]
  %v89 = vld [vmem:[%s1 + $0xf4] sm:$0xf]
  %v90 = vld [vmem:[%s1 + $0xf8] sm:$0xf]
  %v91 = vld [vmem:[%s1 + $0xfc] sm:$0xf]
  %v92 = vld [vmem:[%s1 + $0x100] sm:$0xf]
  %v93 = vld [vmem:[%s1 + $0x104] sm:$0xf]
  %v94 = vld [vmem:[%s1 + $0x108] sm:$0xf]
  %v95 = vld [vmem:[%s1 + $0x10c] sm:$0xf]
  %v96 = vld [vmem:[%s1 + $0x110] sm:$0xf]
  %v97 = vld [vmem:[%s1 + $0x114] sm:$0xf]
  %v98 = vld [vmem:[%s1 + $0x118] sm:$0xf]
  %v99 = vld [vmem:[%s1 + $0x11c] sm:$0xf]
  %v100 = vld [vmem:[%s2] sm:$0x1]
  %v102 = vlaneseq
  %v103 = vshrl.u32 %v102, 7
  %v104 = vsub.s32 0, %v103
  %v105 = vrot.slane %v100, %v104
  %v108 = vcombine.high %v27, %v27
  %v110 = vunpack.c.l.s4 1966171168
  %v111 = vunpack.c.0.s8 %v110
  %v112 = vlaneseq
  %v113 = vshrl.u32 %v112, 7
  %v114 = vsub.s32 %v111, %v113
  %v115 = vrot.slane %v27, %v114
  %v117 = vunpack.c.l.s4 1966171168
  %v118 = vunpack.c.0.s8 %v117
  %v119 = vlaneseq
  %v120 = vshrl.u32 %v119, 7
  %v121 = vsub.s32 %v118, %v120
  %v122 = vrot.slane %v108, %v121
  %v123 = vcombine.high %v115, %v115
  %v125 = vunpack.c.l.s4 1966171168
  %v126 = vunpack.c.0.s8 %v125
  %v127 = vlaneseq
  %v128 = vshrl.u32 %v127, 7
  %v129 = vsub.s32 %v126, %v128
  %v130 = vrot.slane %v115, %v129
  %v132 = vunpack.c.l.s4 1966171168
  %v133 = vunpack.c.0.s8 %v132
  %v134 = vlaneseq
  %v135 = vshrl.u32 %v134, 7
  %v136 = vsub.s32 %v133, %v135
  %v137 = vrot.slane %v122, %v136
  %v139 = vunpack.c.l.s4 1966171168
  %v140 = vunpack.c.0.s8 %v139
  %v141 = vlaneseq
  %v142 = vshrl.u32 %v141, 7
  %v143 = vsub.s32 %v140, %v142
  %v144 = vrot.slane %v123, %v143
  %v145 = vcombine.high %v130, %v130
  %v146 = vcombine.high %v144, %v144
  %v223 = vunpack.c.l.b16 %v28
  %v224 = vunpack.c.l.b16 %v29
  %v225 = vunpack.c.l.b16 %v30
  %v226 = vunpack.c.l.b16 %v31
  %v227 = vunpack.c.l.b16 %v32
  %v228 = vunpack.c.l.b16 %v33
  %v229 = vunpack.c.l.b16 %v34
  %v230 = vunpack.c.l.b16 %v35
  %v231 = vunpack.c.l.b16 %v36
  %v232 = vunpack.c.l.b16 %v37
  %v233 = vunpack.c.l.b16 %v38
  %v234 = vunpack.c.l.b16 %v39
  %v235 = vunpack.c.l.b16 %v40
  %v236 = vunpack.c.l.b16 %v41
  %v237 = vunpack.c.l.b16 %v42
  %v238 = vunpack.c.l.b16 %v43
  %v239 = vunpack.c.l.b16 %v44
  %v240 = vunpack.c.l.b16 %v45
  %v241 = vunpack.c.l.b16 %v46
  %v242 = vunpack.c.l.b16 %v47
  %v243 = vunpack.c.l.b16 %v48
  %v244 = vunpack.c.l.b16 %v49
  %v245 = vunpack.c.l.b16 %v50
  %v246 = vunpack.c.l.b16 %v51
  %v247 = vunpack.c.l.b16 %v52
  %v248 = vunpack.c.l.b16 %v53
  %v249 = vunpack.c.l.b16 %v54
  %v250 = vunpack.c.l.b16 %v55
  %v251 = vunpack.c.l.b16 %v56
  %v252 = vunpack.c.l.b16 %v57
  %v253 = vunpack.c.l.b16 %v58
  %v254 = vunpack.c.l.b16 %v59
  %v255 = vunpack.c.l.b16 %v60
  %v256 = vunpack.c.l.b16 %v61
  %v257 = vunpack.c.l.b16 %v62
  %v258 = vunpack.c.l.b16 %v63
  %v259 = vunpack.c.l.b16 %v64
  %v260 = vunpack.c.l.b16 %v65
  %v261 = vunpack.c.l.b16 %v66
  %v262 = vunpack.c.l.b16 %v67
  %v263 = vunpack.c.l.b16 %v68
  %v264 = vunpack.c.l.b16 %v69
  %v265 = vunpack.c.l.b16 %v70
  %v266 = vunpack.c.l.b16 %v71
  %v267 = vunpack.c.l.b16 %v72
  %v268 = vunpack.c.l.b16 %v73
  %v269 = vunpack.c.l.b16 %v74
  %v270 = vunpack.c.l.b16 %v75
  %v271 = vunpack.c.l.b16 %v76
  %v272 = vunpack.c.l.b16 %v77
  %v273 = vunpack.c.l.b16 %v78
  %v274 = vunpack.c.l.b16 %v79
  %v275 = vunpack.c.l.b16 %v80
  %v276 = vunpack.c.l.b16 %v81
  %v277 = vunpack.c.l.b16 %v82
  %v278 = vunpack.c.l.b16 %v83
  %v279 = vunpack.c.l.b16 %v84
  %v280 = vunpack.c.l.b16 %v85
  %v281 = vunpack.c.l.b16 %v86
  %v282 = vunpack.c.l.b16 %v87
  %v283 = vunpack.c.l.b16 %v88
  %v284 = vunpack.c.l.b16 %v89
  %v285 = vunpack.c.l.b16 %v90
  %v286 = vunpack.c.l.b16 %v91
  %v287 = vunpack.c.l.b16 %v92
  %v288 = vunpack.c.l.b16 %v93
  %v289 = vunpack.c.l.b16 %v94
  %v290 = vunpack.c.l.b16 %v95
  %v291 = vunpack.c.l.b16 %v96
  %v292 = vunpack.c.l.b16 %v97
  %v293 = vunpack.c.l.b16 %v98
  %v294 = vunpack.c.l.b16 %v99
  %v295 = vpack.c.b16 %v224, %v223
  %v296 = vpack.c.b16 %v226, %v225
  %v297 = vpack.c.b16 %v228, %v227
  %v298 = vpack.c.b16 %v230, %v229
  %v299 = vpack.c.b16 %v232, %v231
  %v300 = vpack.c.b16 %v234, %v233
  %v301 = vpack.c.b16 %v236, %v235
  %v302 = vpack.c.b16 %v238, %v237
  %v303 = vpack.c.b16 %v240, %v239
  %v304 = vpack.c.b16 %v242, %v241
  %v305 = vpack.c.b16 %v244, %v243
  %v306 = vpack.c.b16 %v246, %v245
  %v307 = vpack.c.b16 %v248, %v247
  %v308 = vpack.c.b16 %v250, %v249
  %v309 = vpack.c.b16 %v252, %v251
  %v310 = vpack.c.b16 %v254, %v253
  %v311 = vpack.c.b16 %v256, %v255
  %v312 = vpack.c.b16 %v258, %v257
  %v313 = vpack.c.b16 %v260, %v259
  %v314 = vpack.c.b16 %v262, %v261
  %v315 = vpack.c.b16 %v264, %v263
  %v316 = vpack.c.b16 %v266, %v265
  %v317 = vpack.c.b16 %v268, %v267
  %v318 = vpack.c.b16 %v270, %v269
  %v319 = vpack.c.b16 %v272, %v271
  %v320 = vpack.c.b16 %v274, %v273
  %v321 = vpack.c.b16 %v276, %v275
  %v322 = vpack.c.b16 %v278, %v277
  %v323 = vpack.c.b16 %v280, %v279
  %v324 = vpack.c.b16 %v282, %v281
  %v325 = vpack.c.b16 %v284, %v283
  %v326 = vpack.c.b16 %v286, %v285
  %v327 = vpack.c.b16 %v288, %v287
  %v328 = vpack.c.b16 %v290, %v289
  %v329 = vpack.c.b16 %v292, %v291
  %v330 = vpack.c.b16 %v294, %v293
  %vm367 = vcmask 523264
  %v369 = vsel %vm367, %v137, 0
  %371 = vmatprep.subr.bf16.mxu0 0
  %372 = vmatpush1.bf16.msra.mxu0 %v295
  %373 = vmatprep.subr.bf16.mxu0 0
  %374 = vmatpush1.bf16.msra.mxu0 %v296
  %375 = vmatprep.subr.bf16.mxu0 0
  %376 = vmatpush1.bf16.msra.mxu0 %v297
  %377 = vmatprep.subr.bf16.mxu0 0
  %378 = vmatpush1.bf16.msra.mxu0 %v298
  %379 = vmatprep.subr.bf16.mxu0 0
  %380 = vmatpush1.bf16.msra.mxu0 %v299
  %381 = vmatprep.subr.bf16.mxu0 0
  %382 = vmatpush1.bf16.msra.mxu0 %v300
  %383 = vmatprep.subr.bf16.mxu0 0
  %384 = vmatpush1.bf16.msra.mxu0 %v301
  %385 = vmatprep.subr.bf16.mxu0 0
  %386 = vmatpush1.bf16.msra.mxu0 %v302
  %387 = vmatprep.subr.bf16.mxu0 0
  %388 = vmatpush1.bf16.msra.mxu0 %v303
  %389 = vmatprep.subr.bf16.mxu0 0
  %390 = vmatpush1.bf16.msra.mxu0 %v304
  %391 = vmatprep.subr.bf16.mxu0 0
  %392 = vmatpush1.bf16.msra.mxu0 %v305
  %393 = vmatprep.subr.bf16.mxu0 0
  %394 = vmatpush1.bf16.msra.mxu0 %v306
  %395 = vmatprep.subr.bf16.mxu0 0
  %396 = vmatpush1.bf16.msra.mxu0 %v307
  %397 = vmatprep.subr.bf16.mxu0 0
  %398 = vmatpush1.bf16.msra.mxu0 %v308
  %399 = vmatprep.subr.bf16.mxu0 0
  %400 = vmatpush1.bf16.msra.mxu0 %v309
  %401 = vmatprep.subr.bf16.mxu0 0
  %402 = vmatpush1.bf16.msra.mxu0 %v310
  %403 = vmatprep.mubr.bf16.mxu0 %v144
  %404 = vmatmul.mubr.bf16.gmra.mrb[0].mxu0 %v130
  %v405 = vpop.f32.mrb[0].mxu0
  %v406 = vadd.f32 %v105, %v405
  %v407 = vpop.f32.mrb[0].mxu0
  %v408 = vpop.f32.mrb[0].mxu0
  %v409 = vpop.f32.mrb[0].mxu0
  %410 = vdwg.mxu0
  %411 = vmatprep.subr.bf16.mxu0 0
  %412 = vmatpush1.bf16.msra.mxu0 %v311
  %413 = vmatprep.subr.bf16.mxu0 0
  %414 = vmatpush1.bf16.msra.mxu0 %v312
  %415 = vmatprep.subr.bf16.mxu0 0
  %416 = vmatpush1.bf16.msra.mxu0 %v313
  %417 = vmatprep.subr.bf16.mxu0 0
  %418 = vmatpush1.bf16.msra.mxu0 %v314
  %419 = vmatprep.subr.bf16.mxu0 0
  %420 = vmatpush1.bf16.msra.mxu0 %v315
  %421 = vmatprep.subr.bf16.mxu0 0
  %422 = vmatpush1.bf16.msra.mxu0 %v316
  %423 = vmatprep.subr.bf16.mxu0 0
  %424 = vmatpush1.bf16.msra.mxu0 %v317
  %425 = vmatprep.subr.bf16.mxu0 0
  %426 = vmatpush1.bf16.msra.mxu0 %v318
  %427 = vmatprep.subr.bf16.mxu0 0
  %428 = vmatpush1.bf16.msra.mxu0 %v319
  %429 = vmatprep.subr.bf16.mxu0 0
  %430 = vmatpush1.bf16.msra.mxu0 %v320
  %431 = vmatprep.subr.bf16.mxu0 0
  %432 = vmatpush1.bf16.msra.mxu0 %v321
  %433 = vmatprep.subr.bf16.mxu0 0
  %434 = vmatpush1.bf16.msra.mxu0 %v322
  %435 = vmatprep.subr.bf16.mxu0 0
  %436 = vmatpush1.bf16.msra.mxu0 %v323
  %437 = vmatprep.subr.bf16.mxu0 0
  %438 = vmatpush1.bf16.msra.mxu0 %v324
  %439 = vmatprep.subr.bf16.mxu0 0
  %440 = vmatpush1.bf16.msra.mxu0 %v325
  %441 = vmatprep.subr.bf16.mxu0 0
  %442 = vmatpush1.bf16.msra.mxu0 %v326
  %443 = vmatprep.mubr.bf16.mxu0 %v146
  %444 = vmatmul.mubr.bf16.gmra.mrb[0].mxu0 %v145
  %v445 = vpop.f32.mrb[0].mxu0
  %v446 = vadd.f32 %v406, %v445
  %v447 = vpop.f32.mrb[0].mxu0
  %v448 = vpop.f32.mrb[0].mxu0
  %v449 = vpop.f32.mrb[0].mxu0
  %450 = vdwg.mxu0
  %451 = vmatprep.subr.bf16.mxu0 0
  %452 = vmatpush1.bf16.msra.mxu0 %v327
  %453 = vmatprep.subr.bf16.mxu0 0
  %454 = vmatpush1.bf16.msra.mxu0 %v328
  %455 = vmatprep.subr.bf16.mxu0 0
  %456 = vmatpush1.bf16.msra.mxu0 %v329
  %457 = vmatprep.subr.bf16.mxu0 0
  %458 = vmatpush1.bf16.msra.mxu0 %v330
  %459 = vmatprep.subr.bf16.mxu0 0
  %460 = vmatpush1.bf16.msra.mxu0 0
  %461 = vmatprep.subr.bf16.mxu0 0
  %462 = vmatpush1.bf16.msra.mxu0 0
  %463 = vmatprep.subr.bf16.mxu0 0
  %464 = vmatpush1.bf16.msra.mxu0 0
  %465 = vmatprep.subr.bf16.mxu0 0
  %466 = vmatpush1.bf16.msra.mxu0 0
  %467 = vmatprep.subr.bf16.mxu0 0
  %468 = vmatpush1.bf16.msra.mxu0 0
  %469 = vmatprep.subr.bf16.mxu0 0
  %470 = vmatpush1.bf16.msra.mxu0 0
  %471 = vmatprep.subr.bf16.mxu0 0
  %472 = vmatpush1.bf16.msra.mxu0 0
  %473 = vmatprep.subr.bf16.mxu0 0
  %474 = vmatpush1.bf16.msra.mxu0 0
  %475 = vmatprep.subr.bf16.mxu0 0
  %476 = vmatpush1.bf16.msra.mxu0 0
  %477 = vmatprep.subr.bf16.mxu0 0
  %478 = vmatpush1.bf16.msra.mxu0 0
  %479 = vmatprep.subr.bf16.mxu0 0
  %480 = vmatpush1.bf16.msra.mxu0 0
  %481 = vmatprep.subr.bf16.mxu0 0
  %482 = vmatpush1.bf16.msra.mxu0 0
  %483 = vmatprep.mubr.bf16.mxu0 0
  %484 = vmatmul.mubr.bf16.gmra.mrb[0].mxu0 %v369
  %v485 = vpop.f32.mrb[0].mxu0
  %v486 = vadd.f32 %v446, %v485
  %v487 = vpop.f32.mrb[0].mxu0
  %v488 = vpop.f32.mrb[0].mxu0
  %v489 = vpop.f32.mrb[0].mxu0
  %490 = vdwg.mxu0
  %v491 = vmax.f32 %v486, 0.0
  %v492 = vpack.c.bf16 %v491, %v491
  %v493 = vld [vmem:[%s3] sm:$0xff]
  %v494 = vld [vmem:[%s3 + $0x8] sm:$0xff]
  %v495 = vld [vmem:[%s3 + $0x10] sm:$0xff]
  %v496 = vld [vmem:[%s3 + $0x18] sm:$0xff]
  %v497 = vld [vmem:[%s3 + $0x20] sm:$0xff]
  %v498 = vld [vmem:[%s3 + $0x28] sm:$0xff]
  %v499 = vld [vmem:[%s3 + $0x30] sm:$0xff]
  %v500 = vld [vmem:[%s3 + $0x38] sm:$0xff]
  %v501 = vld [vmem:[%s3 + $0x40] sm:$0xff]
  %v502 = vld [vmem:[%s3 + $0x48] sm:$0xff]
  %v503 = vld [vmem:[%s3 + $0x50] sm:$0xff]
  %v504 = vld [vmem:[%s3 + $0x58] sm:$0xff]
  %v505 = vld [vmem:[%s3 + $0x60] sm:$0xff]
  %v506 = vld [vmem:[%s3 + $0x68] sm:$0xff]
  %v507 = vld [vmem:[%s3 + $0x70] sm:$0xff]
  %v508 = vld [vmem:[%s3 + $0x78] sm:$0xff]
  %v509 = vld [vmem:[%s4] sm:$0xf]
  %v511 = vlaneseq
  %v512 = vshrl.u32 %v511, 7
  %v513 = vsub.s32 0, %v512
  %v514 = vrot.slane %v509, %v513
  %v515 = vlaneseq
  %v516 = vshrl.u32 %v515, 7
  %v517 = vsub.s32 1, %v516
  %v518 = vrot.slane %v509, %v517
  %v519 = vlaneseq
  %v520 = vshrl.u32 %v519, 7
  %v521 = vsub.s32 2, %v520
  %v522 = vrot.slane %v509, %v521
  %v523 = vlaneseq
  %v524 = vshrl.u32 %v523, 7
  %v525 = vsub.s32 3, %v524
  %v526 = vrot.slane %v509, %v525
  %v547 = vunpack.c.l.b16 %v493
  %v548 = vunpack.c.h.b16 %v493
  %v549 = vunpack.c.l.b16 %v494
  %v550 = vunpack.c.h.b16 %v494
  %v551 = vunpack.c.l.b16 %v495
  %v552 = vunpack.c.h.b16 %v495
  %v553 = vunpack.c.l.b16 %v496
  %v554 = vunpack.c.h.b16 %v496
  %v555 = vunpack.c.l.b16 %v497
  %v556 = vunpack.c.h.b16 %v497
  %v557 = vunpack.c.l.b16 %v498
  %v558 = vunpack.c.h.b16 %v498
  %v559 = vunpack.c.l.b16 %v499
  %v560 = vunpack.c.h.b16 %v499
  %v561 = vunpack.c.l.b16 %v500
  %v562 = vunpack.c.h.b16 %v500
  %v563 = vunpack.c.l.b16 %v501
  %v564 = vunpack.c.h.b16 %v501
  %v565 = vunpack.c.l.b16 %v502
  %v566 = vunpack.c.h.b16 %v502
  %v567 = vunpack.c.l.b16 %v503
  %v568 = vunpack.c.h.b16 %v503
  %v569 = vunpack.c.l.b16 %v504
  %v570 = vunpack.c.h.b16 %v504
  %v571 = vunpack.c.l.b16 %v505
  %v572 = vunpack.c.h.b16 %v505
  %v573 = vunpack.c.l.b16 %v506
  %v574 = vunpack.c.h.b16 %v506
  %v575 = vunpack.c.l.b16 %v507
  %v576 = vunpack.c.h.b16 %v507
  %v577 = vunpack.c.l.b16 %v508
  %v578 = vunpack.c.h.b16 %v508
  %v579 = vpack.c.b16 %v551, %v547
  %v580 = vpack.c.b16 %v552, %v548
  %v581 = vpack.c.b16 %v553, %v549
  %v582 = vpack.c.b16 %v554, %v550
  %v583 = vpack.c.b16 %v559, %v555
  %v584 = vpack.c.b16 %v560, %v556
  %v585 = vpack.c.b16 %v561, %v557
  %v586 = vpack.c.b16 %v562, %v558
  %v587 = vpack.c.b16 %v567, %v563
  %v588 = vpack.c.b16 %v568, %v564
  %v589 = vpack.c.b16 %v569, %v565
  %v590 = vpack.c.b16 %v570, %v566
  %v591 = vpack.c.b16 %v575, %v571
  %v592 = vpack.c.b16 %v576, %v572
  %v593 = vpack.c.b16 %v577, %v573
  %v594 = vpack.c.b16 %v578, %v574
  %v612 = vsel %vm367, %v492, 0
  %614 = vmatprep.subr.bf16.mxu0 %v580
  %615 = vmatpush1.bf16.msra.mxu0 %v579
  %616 = vmatprep.subr.bf16.mxu0 %v584
  %617 = vmatpush1.bf16.msra.mxu0 %v583
  %618 = vmatprep.subr.bf16.mxu0 %v588
  %619 = vmatpush1.bf16.msra.mxu0 %v587
  %620 = vmatprep.subr.bf16.mxu0 %v592
  %621 = vmatpush1.bf16.msra.mxu0 %v591
  %622 = vmatprep.subr.bf16.mxu0 0
  %623 = vmatpush1.bf16.msra.mxu0 0
  %624 = vmatprep.subr.bf16.mxu0 0
  %625 = vmatpush1.bf16.msra.mxu0 0
  %626 = vmatprep.subr.bf16.mxu0 0
  %627 = vmatpush1.bf16.msra.mxu0 0
  %628 = vmatprep.subr.bf16.mxu0 0
  %629 = vmatpush1.bf16.msra.mxu0 0
  %630 = vmatprep.subr.bf16.mxu0 0
  %631 = vmatpush1.bf16.msra.mxu0 0
  %632 = vmatprep.subr.bf16.mxu0 0
  %633 = vmatpush1.bf16.msra.mxu0 0
  %634 = vmatprep.subr.bf16.mxu0 0
  %635 = vmatpush1.bf16.msra.mxu0 0
  %636 = vmatprep.subr.bf16.mxu0 0
  %637 = vmatpush1.bf16.msra.mxu0 0
  %638 = vmatprep.subr.bf16.mxu0 0
  %639 = vmatpush1.bf16.msra.mxu0 0
  %640 = vmatprep.subr.bf16.mxu0 0
  %641 = vmatpush1.bf16.msra.mxu0 0
  %642 = vmatprep.subr.bf16.mxu0 0
  %643 = vmatpush1.bf16.msra.mxu0 0
  %644 = vmatprep.subr.bf16.mxu0 0
  %645 = vmatpush1.bf16.msra.mxu0 0
  %646 = vmatprep.mubr.bf16.mxu0 0
  %647 = vmatmul.mubr.bf16.gmra.mrb[0].mxu0 %v612
  %v648 = vpop.f32.mrb[0].mxu0
  %v649 = vadd.f32 %v514, %v648
  %v650 = vpop.f32.mrb[0].mxu0
  %v651 = vadd.f32 %v518, %v650
  %v652 = vpop.f32.mrb[0].mxu0
  %v653 = vpop.f32.mrb[0].mxu0
  %654 = vdwg.mxu0
  %655 = vmatprep.subr.bf16.mxu0 %v582
  %656 = vmatpush1.bf16.msra.mxu0 %v581
  %657 = vmatprep.subr.bf16.mxu0 %v586
  %658 = vmatpush1.bf16.msra.mxu0 %v585
  %659 = vmatprep.subr.bf16.mxu0 %v590
  %660 = vmatpush1.bf16.msra.mxu0 %v589
  %661 = vmatprep.subr.bf16.mxu0 %v594
  %662 = vmatpush1.bf16.msra.mxu0 %v593
  %663 = vmatprep.subr.bf16.mxu0 0
  %664 = vmatpush1.bf16.msra.mxu0 0
  %665 = vmatprep.subr.bf16.mxu0 0
  %666 = vmatpush1.bf16.msra.mxu0 0
  %667 = vmatprep.subr.bf16.mxu0 0
  %668 = vmatpush1.bf16.msra.mxu0 0
  %669 = vmatprep.subr.bf16.mxu0 0
  %670 = vmatpush1.bf16.msra.mxu0 0
  %671 = vmatprep.subr.bf16.mxu0 0
  %672 = vmatpush1.bf16.msra.mxu0 0
  %673 = vmatprep.subr.bf16.mxu0 0
  %674 = vmatpush1.bf16.msra.mxu0 0
  %675 = vmatprep.subr.bf16.mxu0 0
  %676 = vmatpush1.bf16.msra.mxu0 0
  %677 = vmatprep.subr.bf16.mxu0 0
  %678 = vmatpush1.bf16.msra.mxu0 0
  %679 = vmatprep.subr.bf16.mxu0 0
  %680 = vmatpush1.bf16.msra.mxu0 0
  %681 = vmatprep.subr.bf16.mxu0 0
  %682 = vmatpush1.bf16.msra.mxu0 0
  %683 = vmatprep.subr.bf16.mxu0 0
  %684 = vmatpush1.bf16.msra.mxu0 0
  %685 = vmatprep.subr.bf16.mxu0 0
  %686 = vmatpush1.bf16.msra.mxu0 0
  %687 = vmatprep.mubr.bf16.mxu0 0
  %688 = vmatmul.mubr.bf16.gmra.mrb[0].mxu0 %v612
  %v689 = vpop.f32.mrb[0].mxu0
  %v690 = vadd.f32 %v522, %v689
  %v691 = vpop.f32.mrb[0].mxu0
  %v692 = vadd.f32 %v526, %v691
  %v693 = vpop.f32.mrb[0].mxu0
  %v694 = vpop.f32.mrb[0].mxu0
  %695 = vdwg.mxu0
  %v696 = vmax.f32 %v649, 0.0
  %v697 = vmax.f32 %v651, 0.0
  %v698 = vmax.f32 %v690, 0.0
  %v699 = vmax.f32 %v692, 0.0
  %v700 = vpack.c.bf16 %v696, %v696
  %v701 = vpack.c.bf16 %v697, %v697
  %v702 = vpack.c.bf16 %v698, %v698
  %v703 = vpack.c.bf16 %v699, %v699
  %v704 = vld [vmem:[%s5] sm:$0xf]
  %v705 = vld [vmem:[%s5 + $0x4] sm:$0xf]
  %v706 = vld [vmem:[%s5 + $0x8] sm:$0xf]
  %v707 = vld [vmem:[%s5 + $0xc] sm:$0xf]
  %v708 = vld [vmem:[%s5 + $0x10] sm:$0xf]
  %v709 = vld [vmem:[%s5 + $0x14] sm:$0xf]
  %v710 = vld [vmem:[%s5 + $0x18] sm:$0xf]
  %v711 = vld [vmem:[%s5 + $0x1c] sm:$0xf]
  %v712 = vld [vmem:[%s5 + $0x20] sm:$0xf]
  %v713 = vld [vmem:[%s5 + $0x24] sm:$0xf]
  %v714 = vld [vmem:[%s5 + $0x28] sm:$0xf]
  %v715 = vld [vmem:[%s5 + $0x2c] sm:$0xf]
  %v716 = vld [vmem:[%s5 + $0x30] sm:$0xf]
  %v717 = vld [vmem:[%s5 + $0x34] sm:$0xf]
  %v718 = vld [vmem:[%s5 + $0x38] sm:$0xf]
  %v719 = vld [vmem:[%s5 + $0x3c] sm:$0xf]
  %v720 = vld [vmem:[%s5 + $0x40] sm:$0xf]
  %v721 = vld [vmem:[%s5 + $0x44] sm:$0xf]
  %v722 = vld [vmem:[%s5 + $0x48] sm:$0xf]
  %v723 = vld [vmem:[%s5 + $0x4c] sm:$0xf]
  %v724 = vld [vmem:[%s5 + $0x50] sm:$0xf]
  %v725 = vld [vmem:[%s5 + $0x54] sm:$0xf]
  %v726 = vld [vmem:[%s5 + $0x58] sm:$0xf]
  %v727 = vld [vmem:[%s5 + $0x5c] sm:$0xf]
  %v728 = vld [vmem:[%s5 + $0x60] sm:$0xf]
  %v729 = vld [vmem:[%s5 + $0x64] sm:$0xf]
  %v730 = vld [vmem:[%s5 + $0x68] sm:$0xf]
  %v731 = vld [vmem:[%s5 + $0x6c] sm:$0xf]
  %v732 = vld [vmem:[%s5 + $0x70] sm:$0xf]
  %v733 = vld [vmem:[%s5 + $0x74] sm:$0xf]
  %v734 = vld [vmem:[%s5 + $0x78] sm:$0xf]
  %v735 = vld [vmem:[%s5 + $0x7c] sm:$0xf]
  %v736 = vld [vmem:[%s5 + $0x80] sm:$0xf]
  %v737 = vld [vmem:[%s5 + $0x84] sm:$0xf]
  %v738 = vld [vmem:[%s5 + $0x88] sm:$0xf]
  %v739 = vld [vmem:[%s5 + $0x8c] sm:$0xf]
  %v740 = vld [vmem:[%s5 + $0x90] sm:$0xf]
  %v741 = vld [vmem:[%s5 + $0x94] sm:$0xf]
  %v742 = vld [vmem:[%s5 + $0x98] sm:$0xf]
  %v743 = vld [vmem:[%s5 + $0x9c] sm:$0xf]
  %v744 = vld [vmem:[%s5 + $0xa0] sm:$0xf]
  %v745 = vld [vmem:[%s5 + $0xa4] sm:$0xf]
  %v746 = vld [vmem:[%s5 + $0xa8] sm:$0xf]
  %v747 = vld [vmem:[%s5 + $0xac] sm:$0xf]
  %v748 = vld [vmem:[%s5 + $0xb0] sm:$0xf]
  %v749 = vld [vmem:[%s5 + $0xb4] sm:$0xf]
  %v750 = vld [vmem:[%s5 + $0xb8] sm:$0xf]
  %v751 = vld [vmem:[%s5 + $0xbc] sm:$0xf]
  %v752 = vld [vmem:[%s5 + $0xc0] sm:$0xf]
  %v753 = vld [vmem:[%s5 + $0xc4] sm:$0xf]
  %v754 = vld [vmem:[%s5 + $0xc8] sm:$0xf]
  %v755 = vld [vmem:[%s5 + $0xcc] sm:$0xf]
  %v756 = vld [vmem:[%s5 + $0xd0] sm:$0xf]
  %v757 = vld [vmem:[%s5 + $0xd4] sm:$0xf]
  %v758 = vld [vmem:[%s5 + $0xd8] sm:$0xf]
  %v759 = vld [vmem:[%s5 + $0xdc] sm:$0xf]
  %v760 = vld [vmem:[%s5 + $0xe0] sm:$0xf]
  %v761 = vld [vmem:[%s5 + $0xe4] sm:$0xf]
  %v762 = vld [vmem:[%s5 + $0xe8] sm:$0xf]
  %v763 = vld [vmem:[%s5 + $0xec] sm:$0xf]
  %v764 = vld [vmem:[%s5 + $0xf0] sm:$0xf]
  %v765 = vld [vmem:[%s5 + $0xf4] sm:$0xf]
  %v766 = vld [vmem:[%s5 + $0xf8] sm:$0xf]
  %v767 = vld [vmem:[%s5 + $0xfc] sm:$0xf]
  %v768 = vld [vmem:[%s6] sm:$0x1]
  %v770 = vlaneseq
  %v771 = vshrl.u32 %v770, 7
  %v772 = vsub.s32 0, %v771
  %v773 = vrot.slane %v768, %v772
  %v839 = vunpack.c.l.b16 %v704
  %v840 = vunpack.c.l.b16 %v705
  %v841 = vunpack.c.l.b16 %v706
  %v842 = vunpack.c.l.b16 %v707
  %v843 = vunpack.c.l.b16 %v708
  %v844 = vunpack.c.l.b16 %v709
  %v845 = vunpack.c.l.b16 %v710
  %v846 = vunpack.c.l.b16 %v711
  %v847 = vunpack.c.l.b16 %v712
  %v848 = vunpack.c.l.b16 %v713
  %v849 = vunpack.c.l.b16 %v714
  %v850 = vunpack.c.l.b16 %v715
  %v851 = vunpack.c.l.b16 %v716
  %v852 = vunpack.c.l.b16 %v717
  %v853 = vunpack.c.l.b16 %v718
  %v854 = vunpack.c.l.b16 %v719
  %v855 = vunpack.c.l.b16 %v720
  %v856 = vunpack.c.l.b16 %v721
  %v857 = vunpack.c.l.b16 %v722
  %v858 = vunpack.c.l.b16 %v723
  %v859 = vunpack.c.l.b16 %v724
  %v860 = vunpack.c.l.b16 %v725
  %v861 = vunpack.c.l.b16 %v726
  %v862 = vunpack.c.l.b16 %v727
  %v863 = vunpack.c.l.b16 %v728
  %v864 = vunpack.c.l.b16 %v729
  %v865 = vunpack.c.l.b16 %v730
  %v866 = vunpack.c.l.b16 %v731
  %v867 = vunpack.c.l.b16 %v732
  %v868 = vunpack.c.l.b16 %v733
  %v869 = vunpack.c.l.b16 %v734
  %v870 = vunpack.c.l.b16 %v735
  %v871 = vunpack.c.l.b16 %v736
  %v872 = vunpack.c.l.b16 %v737
  %v873 = vunpack.c.l.b16 %v738
  %v874 = vunpack.c.l.b16 %v739
  %v875 = vunpack.c.l.b16 %v740
  %v876 = vunpack.c.l.b16 %v741
  %v877 = vunpack.c.l.b16 %v742
  %v878 = vunpack.c.l.b16 %v743
  %v879 = vunpack.c.l.b16 %v744
  %v880 = vunpack.c.l.b16 %v745
  %v881 = vunpack.c.l.b16 %v746
  %v882 = vunpack.c.l.b16 %v747
  %v883 = vunpack.c.l.b16 %v748
  %v884 = vunpack.c.l.b16 %v749
  %v885 = vunpack.c.l.b16 %v750
  %v886 = vunpack.c.l.b16 %v751
  %v887 = vunpack.c.l.b16 %v752
  %v888 = vunpack.c.l.b16 %v753
  %v889 = vunpack.c.l.b16 %v754
  %v890 = vunpack.c.l.b16 %v755
  %v891 = vunpack.c.l.b16 %v756
  %v892 = vunpack.c.l.b16 %v757
  %v893 = vunpack.c.l.b16 %v758
  %v894 = vunpack.c.l.b16 %v759
  %v895 = vunpack.c.l.b16 %v760
  %v896 = vunpack.c.l.b16 %v761
  %v897 = vunpack.c.l.b16 %v762
  %v898 = vunpack.c.l.b16 %v763
  %v899 = vunpack.c.l.b16 %v764
  %v900 = vunpack.c.l.b16 %v765
  %v901 = vunpack.c.l.b16 %v766
  %v902 = vunpack.c.l.b16 %v767
  %v903 = vpack.c.b16 %v840, %v839
  %v904 = vpack.c.b16 %v842, %v841
  %v905 = vpack.c.b16 %v844, %v843
  %v906 = vpack.c.b16 %v846, %v845
  %v907 = vpack.c.b16 %v848, %v847
  %v908 = vpack.c.b16 %v850, %v849
  %v909 = vpack.c.b16 %v852, %v851
  %v910 = vpack.c.b16 %v854, %v853
  %v911 = vpack.c.b16 %v856, %v855
  %v912 = vpack.c.b16 %v858, %v857
  %v913 = vpack.c.b16 %v860, %v859
  %v914 = vpack.c.b16 %v862, %v861
  %v915 = vpack.c.b16 %v864, %v863
  %v916 = vpack.c.b16 %v866, %v865
  %v917 = vpack.c.b16 %v868, %v867
  %v918 = vpack.c.b16 %v870, %v869
  %v919 = vpack.c.b16 %v872, %v871
  %v920 = vpack.c.b16 %v874, %v873
  %v921 = vpack.c.b16 %v876, %v875
  %v922 = vpack.c.b16 %v878, %v877
  %v923 = vpack.c.b16 %v880, %v879
  %v924 = vpack.c.b16 %v882, %v881
  %v925 = vpack.c.b16 %v884, %v883
  %v926 = vpack.c.b16 %v886, %v885
  %v927 = vpack.c.b16 %v888, %v887
  %v928 = vpack.c.b16 %v890, %v889
  %v929 = vpack.c.b16 %v892, %v891
  %v930 = vpack.c.b16 %v894, %v893
  %v931 = vpack.c.b16 %v896, %v895
  %v932 = vpack.c.b16 %v898, %v897
  %v933 = vpack.c.b16 %v900, %v899
  %v934 = vpack.c.b16 %v902, %v901
  %967 = vmatprep.subr.bf16.mxu0 0
  %968 = vmatpush1.bf16.msra.mxu0 %v903
  %969 = vmatprep.subr.bf16.mxu0 0
  %970 = vmatpush1.bf16.msra.mxu0 %v904
  %971 = vmatprep.subr.bf16.mxu0 0
  %972 = vmatpush1.bf16.msra.mxu0 %v905
  %973 = vmatprep.subr.bf16.mxu0 0
  %974 = vmatpush1.bf16.msra.mxu0 %v906
  %975 = vmatprep.subr.bf16.mxu0 0
  %976 = vmatpush1.bf16.msra.mxu0 %v907
  %977 = vmatprep.subr.bf16.mxu0 0
  %978 = vmatpush1.bf16.msra.mxu0 %v908
  %979 = vmatprep.subr.bf16.mxu0 0
  %980 = vmatpush1.bf16.msra.mxu0 %v909
  %981 = vmatprep.subr.bf16.mxu0 0
  %982 = vmatpush1.bf16.msra.mxu0 %v910
  %983 = vmatprep.subr.bf16.mxu0 0
  %984 = vmatpush1.bf16.msra.mxu0 %v911
  %985 = vmatprep.subr.bf16.mxu0 0
  %986 = vmatpush1.bf16.msra.mxu0 %v912
  %987 = vmatprep.subr.bf16.mxu0 0
  %988 = vmatpush1.bf16.msra.mxu0 %v913
  %989 = vmatprep.subr.bf16.mxu0 0
  %990 = vmatpush1.bf16.msra.mxu0 %v914
  %991 = vmatprep.subr.bf16.mxu0 0
  %992 = vmatpush1.bf16.msra.mxu0 %v915
  %993 = vmatprep.subr.bf16.mxu0 0
  %994 = vmatpush1.bf16.msra.mxu0 %v916
  %995 = vmatprep.subr.bf16.mxu0 0
  %996 = vmatpush1.bf16.msra.mxu0 %v917
  %997 = vmatprep.subr.bf16.mxu0 0
  %998 = vmatpush1.bf16.msra.mxu0 %v918
  %999 = vmatprep.mubr.bf16.mxu0 %v701
  %1000 = vmatmul.mubr.bf16.gmra.mrb[0].mxu0 %v700
  %v1001 = vpop.f32.mrb[0].mxu0
  %v1002 = vadd.f32 %v773, %v1001
  %v1003 = vpop.f32.mrb[0].mxu0
  %v1004 = vpop.f32.mrb[0].mxu0
  %v1005 = vpop.f32.mrb[0].mxu0
  %1006 = vdwg.mxu0
  %1007 = vmatprep.subr.bf16.mxu0 0
  %1008 = vmatpush1.bf16.msra.mxu0 %v919
  %1009 = vmatprep.subr.bf16.mxu0 0
  %1010 = vmatpush1.bf16.msra.mxu0 %v920
  %1011 = vmatprep.subr.bf16.mxu0 0
  %1012 = vmatpush1.bf16.msra.mxu0 %v921
  %1013 = vmatprep.subr.bf16.mxu0 0
  %1014 = vmatpush1.bf16.msra.mxu0 %v922
  %1015 = vmatprep.subr.bf16.mxu0 0
  %1016 = vmatpush1.bf16.msra.mxu0 %v923
  %1017 = vmatprep.subr.bf16.mxu0 0
  %1018 = vmatpush1.bf16.msra.mxu0 %v924
  %1019 = vmatprep.subr.bf16.mxu0 0
  %1020 = vmatpush1.bf16.msra.mxu0 %v925
  %1021 = vmatprep.subr.bf16.mxu0 0
  %1022 = vmatpush1.bf16.msra.mxu0 %v926
  %1023 = vmatprep.subr.bf16.mxu0 0
  %1024 = vmatpush1.bf16.msra.mxu0 %v927
  %1025 = vmatprep.subr.bf16.mxu0 0
  %1026 = vmatpush1.bf16.msra.mxu0 %v928
  %1027 = vmatprep.subr.bf16.mxu0 0
  %1028 = vmatpush1.bf16.msra.mxu0 %v929
  %1029 = vmatprep.subr.bf16.mxu0 0
  %1030 = vmatpush1.bf16.msra.mxu0 %v930
  %1031 = vmatprep.subr.bf16.mxu0 0
  %1032 = vmatpush1.bf16.msra.mxu0 %v931
  %1033 = vmatprep.subr.bf16.mxu0 0
  %1034 = vmatpush1.bf16.msra.mxu0 %v932
  %1035 = vmatprep.subr.bf16.mxu0 0
  %1036 = vmatpush1.bf16.msra.mxu0 %v933
  %1037 = vmatprep.subr.bf16.mxu0 0
  %1038 = vmatpush1.bf16.msra.mxu0 %v934
  %1039 = vmatprep.mubr.bf16.mxu0 %v703
  %1040 = vmatmul.mubr.bf16.gmra.mrb[0].mxu0 %v702
  %v1041 = vpop.f32.mrb[0].mxu0
  %v1042 = vadd.f32 %v1002, %v1041
  %v1043 = vpop.f32.mrb[0].mxu0
  %v1044 = vpop.f32.mrb[0].mxu0
  %v1045 = vpop.f32.mrb[0].mxu0
  %1046 = vdwg.mxu0
  %vm1047 = vcmask 779264
  %1048 = vst.msk [vmem:[%s7] sm:$0x3] %vm1047, %v1042
  // Predicated region
  $region30: #{qrdqn_forward.5} parent=0 // pred_check
    _
  $region31: #{qrdqn_forward.5} parent=0 // pred_check_branch
    %1050 = sbr.rel (0) target = $region33
  $region32: #{qrdqn_forward.5} parent=0 // pred_region
    _
  $region33: #{qrdqn_forward.5} parent=0 // pred_fallthru
    _
  // Predicated region
  $region34: #{qrdqn_forward.5} parent=0 // pred_check
    _
  $region35: #{qrdqn_forward.5} parent=0 // pred_check_branch
    %1052 = sbr.rel (0) target = $region37
  $region36: #{qrdqn_forward.5} parent=0 // pred_region
    _
  $region37: #{qrdqn_forward.5} parent=0 // pred_fallthru
    _

</llo_original>
